<compile_context>
chip_gen: v5e
topology: v5e:2x2
jax: 0.10.0
libtpu: 0.0.40
codegen_flags: <defaults>
</compile_context>

<pallas_src>
import jax
import jax.numpy as jnp
from jax.experimental import pallas as pl
from jax.experimental.pallas import tpu as pltpu


# ------------------------------ Pallas kernel ------------------------------ #

def _vq_kernel(z_ref, e_ref, esq_ref, zq_ref, idx_ref, sse_ref):
    # z_ref  : [1, C, TM]   channel-major column tile of z (f32)
    # e_ref  : [n_e, C]     codebook (block-constant across the grid)
    # esq_ref: [n_e, 1]     precomputed ||e_k||^2
    # zq_ref : [1, C, TM]   quantized columns
    # idx_ref: [1, 1, TM]   argmin code indices (int32), lane-dense
    # sse_ref: [1, 1, TM]   per-column sum((z_q - z)^2), lane-dense
    z = z_ref[0]                                               # [C, TM]
    e = e_ref[...]                                             # [n_e, C]
    esq = esq_ref[...]                                         # [n_e, 1]

    # Full squared distance: ||z||^2 + ||e||^2 - 2 * E @ Z  (f32 on the MXU).
    prod = jax.lax.dot_general(
        e, z, dimension_numbers=(((1,), (0,)), ((), ())),
        preferred_element_type=jnp.float32)                    # [n_e, TM]
    zsq = jnp.sum(z * z, axis=0, keepdims=True)                # [1, TM]
    scores = zsq + esq - 2.0 * prod                            # [n_e, TM]

    n_e = scores.shape[0]
    min_val = jnp.min(scores, axis=0, keepdims=True)           # [1, TM]
    iota = jax.lax.broadcasted_iota(jnp.int32, scores.shape, 0)  # [n_e, TM]
    # First index attaining the minimum (matches torch.argmin tie-breaking).
    idx = jnp.min(jnp.where(scores <= min_val, iota, n_e),
                  axis=0, keepdims=True)                       # [1, TM] int32

    # Codebook lookup as E^T @ one_hot on the MXU (no vector gather needed).
    one_hot = (iota == idx).astype(jnp.float32)                # [n_e, TM]
    zq = jax.lax.dot_general(
        e, one_hot, dimension_numbers=(((0,), (0,)), ((), ())),
        preferred_element_type=jnp.float32)                    # [C, TM]

    zq_ref[0] = zq.astype(zq_ref.dtype)
    idx_ref[0] = idx.astype(jnp.int32)
    diff = zq - z
    sse_ref[0] = jnp.sum(diff * diff, axis=0, keepdims=True)   # [1, TM]


# ------------------------------- wrapper ----------------------------------- #

def _pick_tm(hw, cap=1024):
    """Largest multiple of 128 dividing hw (<= cap); else the full hw."""
    if hw % 128 == 0:
        best = 128
        cand = 128
        while cand <= min(hw, cap):
            if hw % cand == 0:
                best = cand
            cand += 128
        return best
    return hw


def vector_quantize(z_nchw, codebook, *, beta, legacy=True, tm_cap=1024):
    """Forward pass of VectorQuantizer.

    z_nchw   : [B, C, H, W] with C == e_dim   (PyTorch layout)
    codebook : [n_e, e_dim] embedding weights
    Returns (z_q [B,C,H,W], loss scalar, (None, None, indices [B*H*W])).
    """
    B, C, H, W = z_nchw.shape
    n_e, e_dim = codebook.shape
    assert C == e_dim
    HW = H * W

    tm = _pick_tm(HW, tm_cap)
    num_tiles = HW // tm

    # Channel-major view: a free, contiguous reshape of the NCHW input.
    z3 = z_nchw.reshape(B, C, HW).astype(jnp.float32)          # [B, C, HW]
    e_f32 = codebook.astype(jnp.float32)                       # [n_e, C]
    e_sq = jnp.sum(e_f32 * e_f32, axis=1, keepdims=True)       # [n_e, 1]

    zq3, idx3, sse3 = pl.pallas_call(
        _vq_kernel,
        grid=(B, num_tiles),
        in_specs=[
            pl.BlockSpec((1, C, tm), lambda b, t: (b, 0, t)),   # z column tile
            pl.BlockSpec((n_e, e_dim), lambda b, t: (0, 0)),    # codebook (resident)
            pl.BlockSpec((n_e, 1), lambda b, t: (0, 0)),        # ||e||^2 (resident)
        ],
        out_specs=[
            pl.BlockSpec((1, C, tm), lambda b, t: (b, 0, t)),   # z_q
            pl.BlockSpec((1, 1, tm), lambda b, t: (b, 0, t)),   # indices (lane-dense)
            pl.BlockSpec((1, 1, tm), lambda b, t: (b, 0, t)),   # per-column SSE
        ],
        out_shape=(
            jax.ShapeDtypeStruct((B, C, HW), jnp.float32),
            jax.ShapeDtypeStruct((B, 1, HW), jnp.int32),
            jax.ShapeDtypeStruct((B, 1, HW), jnp.float32),
        ),
        compiler_params=pltpu.CompilerParams(
            dimension_semantics=("parallel", "parallel")),
    )(z3, e_f32, e_sq)

    mse = jnp.sum(sse3) / (B * HW * C)
    # In the forward pass both legacy and non-legacy reduce to (1+beta)*mse;
    # keep the two-term form for fidelity to the module.
    loss = (mse + beta * mse) if legacy else (beta * mse + mse)

    # Forward value of the straight-through estimator z + sg(z_q - z) is z_q,
    # so return the kernel output directly (no extra HBM round trip).
    z_q_nchw = zq3.reshape(B, C, H, W).astype(z_nchw.dtype)
    indices = idx3.reshape(B * HW)                              # (b, h, w) order
    return z_q_nchw, loss, (None, None, indices)


# --------------------------- pure-JAX reference ----------------------------- #

def reference_vq(z_nchw, codebook, *, beta):
    B, C, H, W = z_nchw.shape
    z = jnp.transpose(z_nchw, (0, 2, 3, 1))
    zf = z.reshape(-1, C)
    d = (jnp.sum(zf ** 2, axis=1, keepdims=True)
         + jnp.sum(codebook ** 2, axis=1)[None, :]
         - 2.0 * zf @ codebook.T)
    idx = jnp.argmin(d, axis=1)
    zq = codebook[idx].reshape(z.shape)
    loss = jnp.mean((zq - z) ** 2) + beta * jnp.mean((zq - z) ** 2)
    zq = z + jax.lax.stop_gradient(zq - z)
    return jnp.transpose(zq, (0, 3, 1, 2)), loss, idx


# --------------------------------- main ------------------------------------- #

if __name__ == "__main__":
    B, e_dim, H, W = 2, 64, 16, 16
    n_e = 256
    beta = 0.25

    key = jax.random.PRNGKey(0)
    k_z, k_e = jax.random.split(key)
    z = jax.random.normal(k_z, (B, e_dim, H, W), jnp.float32)      # NCHW
    # PyTorch init: uniform(-1/n_e, 1/n_e)
    codebook = jax.random.uniform(k_e, (n_e, e_dim), jnp.float32,
                                  minval=-1.0 / n_e, maxval=1.0 / n_e)

    z_q, loss, (_, _, idx) = vector_quantize(z, codebook, beta=beta)
    z_q = jax.block_until_ready(z_q)
    loss = jax.block_until_ready(loss)
    idx = jax.block_until_ready(idx)

    z_q_ref, loss_ref, idx_ref = reference_vq(z, codebook, beta=beta)
    z_q_ref = jax.block_until_ready(z_q_ref)

    assert z_q.shape == (B, e_dim, H, W), z_q.shape
    assert idx.shape == (B * H * W,), idx.shape
    assert jnp.array_equal(idx, idx_ref.astype(idx.dtype)), "index mismatch"
    assert jnp.allclose(z_q, z_q_ref, rtol=1e-5, atol=1e-5), (
        float(jnp.max(jnp.abs(z_q - z_q_ref))))
    assert jnp.allclose(loss, loss_ref, rtol=1e-5, atol=1e-6), (
        float(loss), float(loss_ref))

    print("KERNEL_OK")
</pallas_src>

<mosaic_0001>
module attributes {stable_mosaic.version = 11 : i64} {
  func.func @_vq_kernel(%arg0: i32, %arg1: i32, %arg2: memref<1x64x256xf32, #tpu.memory_space<vmem>>, %arg3: memref<256x64xf32, #tpu.memory_space<vmem>>, %arg4: memref<256x1xf32, #tpu.memory_space<vmem>>, %arg5: memref<1x64x256xf32, #tpu.memory_space<vmem>>, %arg6: memref<1x1x256xi32, #tpu.memory_space<vmem>>, %arg7: memref<1x1x256xf32, #tpu.memory_space<vmem>>) attributes {dimension_semantics = [#tpu.dimension_semantics<parallel>, #tpu.dimension_semantics<parallel>], iteration_bounds = array<i64: 2, 1>, scalar_prefetch = 0 : i64, scratch_operands = 0 : i64, tpu.core_type = #tpu.core_type<tc>, window_params = [{transform_indices = @transform_0, window_bounds = array<i64: 1, 64, 256>}, {pipeline_mode = #tpu.pipeline_mode<synchronous>, transform_indices = @transform_1, window_bounds = array<i64: 256, 64>}, {pipeline_mode = #tpu.pipeline_mode<synchronous>, transform_indices = @transform_2, window_bounds = array<i64: 256, 1>}, {transform_indices = @transform_3, window_bounds = array<i64: 1, 64, 256>}, {transform_indices = @transform_4, window_bounds = array<i64: 1, 1, 256>}, {transform_indices = @transform_5, window_bounds = array<i64: 1, 1, 256>}]} {
    %c0 = arith.constant 0 : index
    %c0_0 = arith.constant 0 : index
    %c0_1 = arith.constant 0 : index
    %0 = vector.load %arg2[%c0, %c0_0, %c0_1] : memref<1x64x256xf32, #tpu.memory_space<vmem>>, vector<1x64x256xf32>
    %1 = vector.shape_cast %0 : vector<1x64x256xf32> to vector<64x256xf32>
    %c0_2 = arith.constant 0 : index
    %c0_3 = arith.constant 0 : index
    %2 = vector.load %arg3[%c0_2, %c0_3] : memref<256x64xf32, #tpu.memory_space<vmem>>, vector<256x64xf32>
    %c0_4 = arith.constant 0 : index
    %c0_5 = arith.constant 0 : index
    %3 = vector.load %arg4[%c0_4, %c0_5] : memref<256x1xf32, #tpu.memory_space<vmem>>, vector<256x1xf32>
    %cst = arith.constant dense<0.000000e+00> : vector<256x256xf32>
    %4 = tpu.matmul %2, %1, %cst {dimension_numbers = #tpu.dot_dimension_numbers<[1], [0], [0], [1], [0, 0, 1, 1], [], []>} : vector<256x64xf32>, vector<64x256xf32>, vector<256x256xf32> -> vector<256x256xf32>
    %5 = arith.mulf %1, %1 : vector<64x256xf32>
    %cst_6 = arith.constant dense<0.000000e+00> : vector<256xf32>
    %6 = vector.multi_reduction <add>, %5, %cst_6 [0] : vector<64x256xf32> to vector<256xf32>
    %7 = vector.shape_cast %6 : vector<256xf32> to vector<1x256xf32>
    %8 = vector.broadcast %7 : vector<1x256xf32> to vector<256x256xf32>
    %9 = vector.broadcast %3 : vector<256x1xf32> to vector<256x256xf32>
    %10 = arith.addf %8, %9 : vector<256x256xf32>
    %cst_7 = arith.constant 2.000000e+00 : f32
    %11 = vector.broadcast %cst_7 : f32 to vector<256x256xf32>
    %12 = arith.mulf %11, %4 : vector<256x256xf32>
    %13 = arith.subf %10, %12 : vector<256x256xf32>
    %cst_8 = arith.constant dense<0x7F800000> : vector<256xf32>
    %14 = vector.multi_reduction <minimumf>, %13, %cst_8 [0] : vector<256x256xf32> to vector<256xf32>
    %15 = vector.shape_cast %14 : vector<256xf32> to vector<1x256xf32>
    %16 = tpu.iota {dimensions = array<i32: 0>} : vector<256x256xi32>
    %17 = vector.broadcast %15 : vector<1x256xf32> to vector<256x256xf32>
    %18 = arith.cmpf ole, %13, %17 : vector<256x256xf32>
    %c256_i32 = arith.constant 256 : i32
    %19 = vector.broadcast %c256_i32 : i32 to vector<256x256xi32>
    %20 = arith.select %18, %16, %19 : vector<256x256xi1>, vector<256x256xi32>
    %cst_9 = arith.constant dense<2147483647> : vector<256xi32>
    %21 = vector.multi_reduction <minsi>, %20, %cst_9 [0] : vector<256x256xi32> to vector<256xi32>
    %22 = vector.shape_cast %21 : vector<256xi32> to vector<1x256xi32>
    %23 = vector.broadcast %22 : vector<1x256xi32> to vector<256x256xi32>
    %24 = arith.cmpi eq, %16, %23 : vector<256x256xi32>
    %25 = arith.extui %24 : vector<256x256xi1> to vector<256x256xi32>
    %26 = arith.sitofp %25 : vector<256x256xi32> to vector<256x256xf32>
    %cst_10 = arith.constant dense<0.000000e+00> : vector<64x256xf32>
    %27 = tpu.matmul %2, %26, %cst_10 {dimension_numbers = #tpu.dot_dimension_numbers<[0], [0], [1], [1], [0, 1, 1, 1], [], []>} : vector<256x64xf32>, vector<256x256xf32>, vector<64x256xf32> -> vector<64x256xf32>
    %c0_11 = arith.constant 0 : index
    %c0_12 = arith.constant 0 : index
    %c0_13 = arith.constant 0 : index
    %28 = vector.load %arg5[%c0_11, %c0_12, %c0_13] : memref<1x64x256xf32, #tpu.memory_space<vmem>>, vector<1x64x256xf32>
    %29 = vector.shape_cast %28 : vector<1x64x256xf32> to vector<64x256xf32>
    %30 = vector.shape_cast %27 : vector<64x256xf32> to vector<1x64x256xf32>
    tpu.vector_store %arg5[%c0_11, %c0_12, %c0_13], %30 {strides = array<i32>} : memref<1x64x256xf32, #tpu.memory_space<vmem>>, vector<1x64x256xf32>,
    %c0_14 = arith.constant 0 : index
    %c0_15 = arith.constant 0 : index
    %c0_16 = arith.constant 0 : index
    %31 = vector.load %arg6[%c0_14, %c0_15, %c0_16] : memref<1x1x256xi32, #tpu.memory_space<vmem>>, vector<1x1x256xi32>
    %32 = vector.shape_cast %31 : vector<1x1x256xi32> to vector<1x256xi32>
    %33 = vector.shape_cast %22 : vector<1x256xi32> to vector<1x1x256xi32>
    tpu.vector_store %arg6[%c0_14, %c0_15, %c0_16], %33 {strides = array<i32>} : memref<1x1x256xi32, #tpu.memory_space<vmem>>, vector<1x1x256xi32>,
    %34 = arith.subf %27, %1 : vector<64x256xf32>
    %35 = arith.mulf %34, %34 : vector<64x256xf32>
    %cst_17 = arith.constant dense<0.000000e+00> : vector<256xf32>
    %36 = vector.multi_reduction <add>, %35, %cst_17 [0] : vector<64x256xf32> to vector<256xf32>
    %37 = vector.shape_cast %36 : vector<256xf32> to vector<1x256xf32>
    %c0_18 = arith.constant 0 : index
    %c0_19 = arith.constant 0 : index
    %c0_20 = arith.constant 0 : index
    %38 = vector.load %arg7[%c0_18, %c0_19, %c0_20] : memref<1x1x256xf32, #tpu.memory_space<vmem>>, vector<1x1x256xf32>
    %39 = vector.shape_cast %38 : vector<1x1x256xf32> to vector<1x256xf32>
    %40 = vector.shape_cast %37 : vector<1x256xf32> to vector<1x1x256xf32>
    tpu.vector_store %arg7[%c0_18, %c0_19, %c0_20], %40 {strides = array<i32>} : memref<1x1x256xf32, #tpu.memory_space<vmem>>, vector<1x1x256xf32>,
    return
  }
  func.func @transform_0(%arg0: i32, %arg1: i32) -> (i32, i32, i32) {
    %c0_i32 = arith.constant 0 : i32
    %c0_i32_0 = arith.constant 0 : i32
    return %arg0, %c0_i32, %arg1 : i32, i32, i32
  }
  func.func @transform_1(%arg0: i32, %arg1: i32) -> (i32, i32) {
    %c0_i32 = arith.constant 0 : i32
    %c0_i32_0 = arith.constant 0 : i32
    %c0_i32_1 = arith.constant 0 : i32
    return %c0_i32, %c0_i32_0 : i32, i32
  }
  func.func @transform_2(%arg0: i32, %arg1: i32) -> (i32, i32) {
    %c0_i32 = arith.constant 0 : i32
    %c0_i32_0 = arith.constant 0 : i32
    %c0_i32_1 = arith.constant 0 : i32
    return %c0_i32, %c0_i32_0 : i32, i32
  }
  func.func @transform_3(%arg0: i32, %arg1: i32) -> (i32, i32, i32) {
    %c0_i32 = arith.constant 0 : i32
    %c0_i32_0 = arith.constant 0 : i32
    return %arg0, %c0_i32, %arg1 : i32, i32, i32
  }
  func.func @transform_4(%arg0: i32, %arg1: i32) -> (i32, i32, i32) {
    %c0_i32 = arith.constant 0 : i32
    %c0_i32_0 = arith.constant 0 : i32
    return %arg0, %c0_i32, %arg1 : i32, i32, i32
  }
  func.func @transform_5(%arg0: i32, %arg1: i32) -> (i32, i32, i32) {
    %c0_i32 = arith.constant 0 : i32
    %c0_i32_0 = arith.constant 0 : i32
    return %arg0, %c0_i32, %arg1 : i32, i32, i32
  }
}

</mosaic_0001>

<llo_original>
// kernel: tpu_custom_call.1
$region0: #{tpu_custom_call.1}
  #allocation0 [shape = 'u32[]', space=smem, size = 0x4, offset = 0x4, fixed_abs, tag = 'smem constant byte address 0x4 - core index']
  #allocation1 [shape = 'u32[72,128]{1,0:T(1,128)}', space=vmem, size = 0x9000, scoped, tag = 'internal scratch']
  %s0 = inlined_call_operand.vmem [shape: f32[2,64,256], index: 0, kind: input, shape index: {}]
  %s1 = inlined_call_operand.vmem [shape: f32[256,64], index: 1, kind: input, shape index: {}]
  %s2 = inlined_call_operand.vmem [shape: f32[256,1], index: 2, kind: input, shape index: {}]
  %s3 = inlined_call_operand.hbm [shape: f32[2,64,256], index: 3, kind: output, shape index: {0}]
  %s4 = inlined_call_operand.hbm [shape: s32[2,1,256], index: 4, kind: output, shape index: {1}]
  %s5 = inlined_call_operand.hbm [shape: f32[2,1,256], index: 5, kind: output, shape index: {2}]
  %6 = xla_tuple %s3, %s4, %s5
  %s7 = sld [smem:[#allocation0]]
  $region61: #{tpu_custom_call.1} parent=0
    _
  %s9 = ssub.s32 1, %s7
  %s10 = scalar_select 0, %s9, %s7
  $region1: #{tpu_custom_call.1} parent=0
    #allocation2 [shape = 'u8[131072]{0}', space=vmem, size = 0x20000, scoped, tag = 'output window, operand 0']
    #allocation3 [shape = 's32[2]{0}', space=sflag, size = 0x8, scoped, tag = 'scoped memory for tpu_custom_call.1']
    #allocation4 [shape = 'u8[2048]{0}', space=vmem, size = 0x800, scoped, tag = 'output window, operand 1']
    #allocation5 [shape = 's32[2]{0}', space=sflag, size = 0x8, scoped, tag = 'scoped memory for tpu_custom_call.1']
    #allocation6 [shape = 'u8[2048]{0}', space=vmem, size = 0x800, scoped, tag = 'output window, operand 2']
    %11 = vsyncpa [#allocation3], 0
    %s12 = scalar_lea.sflag [#allocation3], 1
    %13 = vsyncpa %s12, 0
    %14 = vsyncpa [#allocation5], 0
    %s15 = scalar_lea.sflag [#allocation5], 1
    %16 = vsyncpa %s15, 0
    loop: start=0, step=1, limit=4
    $region2: #{tpu_custom_call.1} parent=1 // loop_pre_header
      _
    $region3: #{tpu_custom_call.1} parent=1 // loop_header
      %s18 = sphi 0, %s22
      %p19 = scmp.ge.s32.totalorder %s18, 4
      %s25 = sphi 0, %s37
      %s26 = sphi 0, %s33
      %s27 = sphi 0, %s25
      %s28 = sphi 0, %s26
      %s29 = sphi 0, %s27
      %s30 = sphi 0, %s28
      %s42 = sphi 0, %s44
      %s45 = sphi 0, %s42
      %s46 = sphi 0, %s45
      %s62 = sphi 0, %s46
      %s66 = sphi 0, %s66
      %s68 = sphi 0, %s66
      %s69 = sphi 0, %s68
      %s83 = sphi 0, %s69
      %s87 = sphi 0, %s87
      %s89 = sphi 0, %s87
      %s90 = sphi 0, %s89
      %s104 = sphi 0, %s90
      %s112 = sphi 0, %s114
      %s115 = sphi 0, %s112
      %s116 = sphi 0, %s115
      %s132 = sphi 0, %s116
      %s140 = sphi 0, %s142
      %s143 = sphi 0, %s140
      %s144 = sphi 0, %s143
      %s160 = sphi 0, %s144
      %s168 = sphi 0, %s170
      %s171 = sphi 0, %s168
      %s172 = sphi 0, %s171
      %s188 = sphi 0, %s172
    $region4: #{tpu_custom_call.1} parent=1 // loop_header_branch
      %21 = sbr.rel (%p19) target = $region8
    $region5: #{tpu_custom_call.1} parent=1 // loop_body
      %s23 = ssub.s32 %s18, 1
      %s24 = ssub.s32 %s18, 2
      %s31 = sadd.s32 1, %s26
      %p32 = scmp.ge.s32.totalorder %s31, 1
      %s33 = scalar_select %p32, 0, %s31
      %s34 = sadd.s32 1, %s25
      %s35 = scalar_select %p32, %s34, %s25
      %p36 = scmp.ge.s32.totalorder %s35, 2
      %s37 = scalar_select %p36, 0, %s35
      %s38 = ssub.s32 %s25, %s37
      %s39 = ssub.s32 %s26, %s33
      %s40 = sor.u32 %s38, %s39
      %p41 = scmp.eq.s32.totalorder %s40, 0
      %s43 = sadd.s32 %s42, 1
      %s44 = scalar_select %p41, %s42, %s43
      %p47 = pneg %p41
      %p48 = scmp.eq.s32.totalorder %s18, 1
      %p49 = por %p47, %p48
      %p50 = scmp.ne.s32.totalorder %s42, %s45
      %p51 = scmp.eq.s32.totalorder %s18, 0
      %p52 = por %p50, %p51
      %p53 = scmp.ne.s32.totalorder %s42, %s45
      %p54 = scmp.eq.s32.totalorder %s23, 1
      %p55 = por %p53, %p54
      %p56 = scmp.ne.s32.totalorder %s45, %s46
      %p57 = scmp.eq.s32.totalorder %s23, 0
      %p58 = por %p56, %p57
      %p59 = scmp.ne.s32.totalorder %s45, %s46
      %p60 = scmp.eq.s32.totalorder %s24, 1
      %p61 = por %p59, %p60
      %p63 = scmp.ne.s32.totalorder %s46, %s62
      %p64 = scmp.eq.s32.totalorder %s24, 0
      %p65 = por %p63, %p64
      %s67 = sadd.s32 %s66, 1
      %p70 = scmp.eq.s32.totalorder %s18, 1
      %p71 = scmp.ne.s32.totalorder %s66, %s68
      %p72 = scmp.eq.s32.totalorder %s18, 0
      %p73 = por %p71, %p72
      %p74 = scmp.ne.s32.totalorder %s66, %s68
      %p75 = scmp.eq.s32.totalorder %s23, 1
      %p76 = por %p74, %p75
      %p77 = scmp.ne.s32.totalorder %s68, %s69
      %p78 = scmp.eq.s32.totalorder %s23, 0
      %p79 = por %p77, %p78
      %p80 = scmp.ne.s32.totalorder %s68, %s69
      %p81 = scmp.eq.s32.totalorder %s24, 1
      %p82 = por %p80, %p81
      %p84 = scmp.ne.s32.totalorder %s69, %s83
      %p85 = scmp.eq.s32.totalorder %s24, 0
      %p86 = por %p84, %p85
      %s88 = sadd.s32 %s87, 1
      %p91 = scmp.eq.s32.totalorder %s18, 1
      %p92 = scmp.ne.s32.totalorder %s87, %s89
      %p93 = scmp.eq.s32.totalorder %s18, 0
      %p94 = por %p92, %p93
      %p95 = scmp.ne.s32.totalorder %s87, %s89
      %p96 = scmp.eq.s32.totalorder %s23, 1
      %p97 = por %p95, %p96
      %p98 = scmp.ne.s32.totalorder %s89, %s90
      %p99 = scmp.eq.s32.totalorder %s23, 0
      %p100 = por %p98, %p99
      %p101 = scmp.ne.s32.totalorder %s89, %s90
      %p102 = scmp.eq.s32.totalorder %s24, 1
      %p103 = por %p101, %p102
      %p105 = scmp.ne.s32.totalorder %s90, %s104
      %p106 = scmp.eq.s32.totalorder %s24, 0
      %p107 = por %p105, %p106
      %s108 = ssub.s32 %s25, %s37
      %s109 = ssub.s32 %s26, %s33
      %s110 = sor.u32 %s108, %s109
      %p111 = scmp.eq.s32.totalorder %s110, 0
      %s113 = sadd.s32 %s112, 1
      %s114 = scalar_select %p111, %s112, %s113
      %p117 = pneg %p111
      %p118 = scmp.eq.s32.totalorder %s18, 1
      %p119 = por %p117, %p118
      %p120 = scmp.ne.s32.totalorder %s112, %s115
      %p121 = scmp.eq.s32.totalorder %s18, 0
      %p122 = por %p120, %p121
      %p123 = scmp.ne.s32.totalorder %s112, %s115
      %p124 = scmp.eq.s32.totalorder %s23, 1
      %p125 = por %p123, %p124
      %p126 = scmp.ne.s32.totalorder %s115, %s116
      %p127 = scmp.eq.s32.totalorder %s23, 0
      %p128 = por %p126, %p127
      %p129 = scmp.ne.s32.totalorder %s115, %s116
      %p130 = scmp.eq.s32.totalorder %s24, 1
      %p131 = por %p129, %p130
      %p133 = scmp.ne.s32.totalorder %s116, %s132
      %p134 = scmp.eq.s32.totalorder %s24, 0
      %p135 = por %p133, %p134
      %s136 = ssub.s32 %s25, %s37
      %s137 = ssub.s32 %s26, %s33
      %s138 = sor.u32 %s136, %s137
      %p139 = scmp.eq.s32.totalorder %s138, 0
      %s141 = sadd.s32 %s140, 1
      %s142 = scalar_select %p139, %s140, %s141
      %p145 = pneg %p139
      %p146 = scmp.eq.s32.totalorder %s18, 1
      %p147 = por %p145, %p146
      %p148 = scmp.ne.s32.totalorder %s140, %s143
      %p149 = scmp.eq.s32.totalorder %s18, 0
      %p150 = por %p148, %p149
      %p151 = scmp.ne.s32.totalorder %s140, %s143
      %p152 = scmp.eq.s32.totalorder %s23, 1
      %p153 = por %p151, %p152
      %p154 = scmp.ne.s32.totalorder %s143, %s144
      %p155 = scmp.eq.s32.totalorder %s23, 0
      %p156 = por %p154, %p155
      %p157 = scmp.ne.s32.totalorder %s143, %s144
      %p158 = scmp.eq.s32.totalorder %s24, 1
      %p159 = por %p157, %p158
      %p161 = scmp.ne.s32.totalorder %s144, %s160
      %p162 = scmp.eq.s32.totalorder %s24, 0
      %p163 = por %p161, %p162
      %s164 = ssub.s32 %s25, %s37
      %s165 = ssub.s32 %s26, %s33
      %s166 = sor.u32 %s164, %s165
      %p167 = scmp.eq.s32.totalorder %s166, 0
      %s169 = sadd.s32 %s168, 1
      %s170 = scalar_select %p167, %s168, %s169
      %p173 = pneg %p167
      %p174 = scmp.eq.s32.totalorder %s18, 1
      %p175 = por %p173, %p174
      %p176 = scmp.ne.s32.totalorder %s168, %s171
      %p177 = scmp.eq.s32.totalorder %s18, 0
      %p178 = por %p176, %p177
      %p179 = scmp.ne.s32.totalorder %s168, %s171
      %p180 = scmp.eq.s32.totalorder %s23, 1
      %p181 = por %p179, %p180
      %p182 = scmp.ne.s32.totalorder %s171, %s172
      %p183 = scmp.eq.s32.totalorder %s23, 0
      %p184 = por %p182, %p183
      %p185 = scmp.ne.s32.totalorder %s171, %s172
      %p186 = scmp.eq.s32.totalorder %s24, 1
      %p187 = por %p185, %p186
      %p189 = scmp.ne.s32.totalorder %s172, %s188
      %p190 = scmp.eq.s32.totalorder %s24, 0
      %p191 = por %p189, %p190
      %p192 = scmp.le.s32.totalorder 1, %s18
      %p193 = scmp.lt.s32.totalorder %s18, 3
      %p194 = pnand %p192, %p193
      %p195 = pneg %p194
      // Predicated region
      $region9: #{tpu_custom_call.1} parent=5 // pred_check
        _
      $region10: #{tpu_custom_call.1} parent=5 // pred_check_branch
        %197 = sbr.rel (%p194) target = $region12
      $region11: #{tpu_custom_call.1} parent=5 // pred_region
        %s198 = ssub.s32 %s18, 1
        // Predicated region
        $region13: #{tpu_custom_call.1} parent=11 // pred_check
          %p199 = pneg %p79
        $region14: #{tpu_custom_call.1} parent=11 // pred_check_branch
          %201 = sbr.rel (%p199) target = $region16
        $region15: #{tpu_custom_call.1} parent=11 // pred_region
          _
        $region16: #{tpu_custom_call.1} parent=11 // pred_fallthru
          _
        // Predicated region
        $region17: #{tpu_custom_call.1} parent=11 // pred_check
          %p202 = pneg %p100
        $region18: #{tpu_custom_call.1} parent=11 // pred_check_branch
          %204 = sbr.rel (%p202) target = $region20
        $region19: #{tpu_custom_call.1} parent=11 // pred_region
          _
        $region20: #{tpu_custom_call.1} parent=11 // pred_fallthru
          _
      $region12: #{tpu_custom_call.1} parent=5 // pred_fallthru
        _
      %p205 = scmp.lt.s32.totalorder %s18, 2
      // Predicated region
      $region21: #{tpu_custom_call.1} parent=5 // pred_check
        %p206 = pneg %p205
      $region22: #{tpu_custom_call.1} parent=5 // pred_check_branch
        %208 = sbr.rel (%p206) target = $region24
      $region23: #{tpu_custom_call.1} parent=5 // pred_region
        // Predicated region
        $region25: #{tpu_custom_call.1} parent=23 // pred_check
          %p209 = pneg %p52
        $region26: #{tpu_custom_call.1} parent=23 // pred_check_branch
          %211 = sbr.rel (%p209) target = $region28
        $region27: #{tpu_custom_call.1} parent=23 // pred_region
          %s212 = smul.u32 2, %s26
          %p213 = scmp.lt.s32.totalorder %s25, 1
          %s214 = scalar_select %p213, %s25, 1
          %p215 = scmp.lt.s32.totalorder %s212, 1
          %s216 = scalar_select %p215, %s212, 1
          %s217 = smul.addr %s214, 16
          %s218 = sadd.s32 %s216, %s217
          %s219 = smul.addr %s218, 8
          %s220 = scalar_lea.vmem %s0, %s219
          %s221 = smul.u32 2, %s26
        $region28: #{tpu_custom_call.1} parent=23 // pred_fallthru
          _
      $region24: #{tpu_custom_call.1} parent=5 // pred_fallthru
        _
      %p222 = scmp.le.s32.totalorder 1, %s18
      %p223 = scmp.lt.s32.totalorder %s18, 3
      %p224 = pnand %p222, %p223
      %p225 = pneg %p224
      // Predicated region
      $region29: #{tpu_custom_call.1} parent=5 // pred_check
        _
      $region30: #{tpu_custom_call.1} parent=5 // pred_check_branch
        %227 = sbr.rel (%p224) target = $region32
      $region31: #{tpu_custom_call.1} parent=5 // pred_region
        %s228 = ssub.s32 %s18, 1
        %s229 = smul.u32 2, %s28
        %p230 = scmp.lt.s32.totalorder %s27, 1
        %s231 = scalar_select %p230, %s27, 1
        %p232 = scmp.lt.s32.totalorder %s229, 1
        %s233 = scalar_select %p232, %s229, 1
        %s234 = smul.addr %s231, 16
        %s235 = sadd.s32 %s233, %s234
        %s236 = smul.addr %s235, 8
        %s237 = scalar_lea.vmem %s0, %s236
        %p238 = pneg %p58
        %p239 = pneg %p55
        %p240 = pneg %p79
        %p241 = pneg %p76
        %p242 = pneg %p100
        %p243 = pneg %p97
        %p244 = pneg %p128
        %p245 = pneg %p125
        %s246 = sand.u32 %s115, 1
        %s247 = scalar_lea.sflag [#allocation3], %s246
        %s248 = sand.u32 %s115, 1
        %s249 = smul.addr %s248, 128
        %s250 = scalar_lea.vmem [#allocation2], %s249
        %p251 = pneg %p156
        %p252 = pneg %p153
        %s253 = sand.u32 %s23, 1
        %s254 = scalar_lea.sflag [#allocation5], %s253
        %s255 = sand.u32 %s143, 1
        %s256 = smul.addr %s255, 2
        %s257 = scalar_lea.vmem [#allocation4], %s256
        %p258 = pneg %p184
        %p259 = pneg %p181
        %s260 = sand.u32 %s23, 1
        %s261 = scalar_lea.sflag [#allocation5], %s260
        %s262 = sand.u32 %s171, 1
        %s263 = smul.addr %s262, 2
        %s264 = scalar_lea.vmem [#allocation6], %s263
        %s265 = smul.u32 2, %s28
        %p266 = scmp.lt.s32.totalorder %s27, 1
        %s267 = scalar_select %p266, %s27, 1
        %p268 = scmp.lt.s32.totalorder %s265, 1
        %s269 = scalar_select %p268, %s265, 1
        %s270 = smul.addr %s267, 16
        %s271 = sadd.s32 %s269, %s270
        %s272 = smul.addr %s271, 8
        %s273 = scalar_lea.vmem %s0, %s272
        %s274 = smul.u32 2, %s28
        %s275 = smul.u32 2, %s28
        %s276 = smul.u32 2, %s28
        %s277 = smul.u32 2, %s28
        %v278 = vld [vmem:[%s273] sm:$0xff]
        %v279 = vld [vmem:[%s273 + $0x8] sm:$0xff]
        %v280 = vld [vmem:[%s273 + $0x10] sm:$0xff]
        %v281 = vld [vmem:[%s273 + $0x18] sm:$0xff]
        %v282 = vld [vmem:[%s273 + $0x20] sm:$0xff]
        %v283 = vld [vmem:[%s273 + $0x28] sm:$0xff]
        %v284 = vld [vmem:[%s273 + $0x30] sm:$0xff]
        %v285 = vld [vmem:[%s273 + $0x38] sm:$0xff]
        %v286 = vld [vmem:[%s273 + $0x40] sm:$0xff]
        %v287 = vld [vmem:[%s273 + $0x48] sm:$0xff]
        %v288 = vld [vmem:[%s273 + $0x50] sm:$0xff]
        %v289 = vld [vmem:[%s273 + $0x58] sm:$0xff]
        %v290 = vld [vmem:[%s273 + $0x60] sm:$0xff]
        %v291 = vld [vmem:[%s273 + $0x68] sm:$0xff]
        %v292 = vld [vmem:[%s273 + $0x70] sm:$0xff]
        %v293 = vld [vmem:[%s273 + $0x78] sm:$0xff]
        %v294 = vld [vmem:[%s1] sm:$0xff]
        %v295 = vld [vmem:[%s1 + $0x8] sm:$0xff]
        %v296 = vld [vmem:[%s1 + $0x10] sm:$0xff]
        %v297 = vld [vmem:[%s1 + $0x18] sm:$0xff]
        %v298 = vld [vmem:[%s1 + $0x20] sm:$0xff]
        %v299 = vld [vmem:[%s1 + $0x28] sm:$0xff]
        %v300 = vld [vmem:[%s1 + $0x30] sm:$0xff]
        %v301 = vld [vmem:[%s1 + $0x38] sm:$0xff]
        %v302 = vld [vmem:[%s1 + $0x40] sm:$0xff]
        %v303 = vld [vmem:[%s1 + $0x48] sm:$0xff]
        %v304 = vld [vmem:[%s1 + $0x50] sm:$0xff]
        %v305 = vld [vmem:[%s1 + $0x58] sm:$0xff]
        %v306 = vld [vmem:[%s1 + $0x60] sm:$0xff]
        %v307 = vld [vmem:[%s1 + $0x68] sm:$0xff]
        %v308 = vld [vmem:[%s1 + $0x70] sm:$0xff]
        %v309 = vld [vmem:[%s1 + $0x78] sm:$0xff]
        %v310 = vld [vmem:[%s1 + $0x80] sm:$0xff]
        %v311 = vld [vmem:[%s1 + $0x88] sm:$0xff]
        %v312 = vld [vmem:[%s1 + $0x90] sm:$0xff]
        %v313 = vld [vmem:[%s1 + $0x98] sm:$0xff]
        %v314 = vld [vmem:[%s1 + $0xa0] sm:$0xff]
        %v315 = vld [vmem:[%s1 + $0xa8] sm:$0xff]
        %v316 = vld [vmem:[%s1 + $0xb0] sm:$0xff]
        %v317 = vld [vmem:[%s1 + $0xb8] sm:$0xff]
        %v318 = vld [vmem:[%s1 + $0xc0] sm:$0xff]
        %v319 = vld [vmem:[%s1 + $0xc8] sm:$0xff]
        %v320 = vld [vmem:[%s1 + $0xd0] sm:$0xff]
        %v321 = vld [vmem:[%s1 + $0xd8] sm:$0xff]
        %v322 = vld [vmem:[%s1 + $0xe0] sm:$0xff]
        %v323 = vld [vmem:[%s1 + $0xe8] sm:$0xff]
        %v324 = vld [vmem:[%s1 + $0xf0] sm:$0xff]
        %v325 = vld [vmem:[%s1 + $0xf8] sm:$0xff]
        %v326 = vld [vmem:[%s2] sm:$0xff]
        %v327 = vld [vmem:[%s2 + $0x8] sm:$0xff]
        %v328 = vld [vmem:[%s2 + $0x10] sm:$0xff]
        %v329 = vld [vmem:[%s2 + $0x18] sm:$0xff]
        %v330 = vld [vmem:[%s2 + $0x20] sm:$0xff]
        %v331 = vld [vmem:[%s2 + $0x28] sm:$0xff]
        %v332 = vld [vmem:[%s2 + $0x30] sm:$0xff]
        %v333 = vld [vmem:[%s2 + $0x38] sm:$0xff]
        %v334 = vld [vmem:[%s2 + $0x40] sm:$0xff]
        %v335 = vld [vmem:[%s2 + $0x48] sm:$0xff]
        %v336 = vld [vmem:[%s2 + $0x50] sm:$0xff]
        %v337 = vld [vmem:[%s2 + $0x58] sm:$0xff]
        %v338 = vld [vmem:[%s2 + $0x60] sm:$0xff]
        %v339 = vld [vmem:[%s2 + $0x68] sm:$0xff]
        %v340 = vld [vmem:[%s2 + $0x70] sm:$0xff]
        %v341 = vld [vmem:[%s2 + $0x78] sm:$0xff]
        %v342 = vld [vmem:[%s2 + $0x80] sm:$0xff]
        %v343 = vld [vmem:[%s2 + $0x88] sm:$0xff]
        %v344 = vld [vmem:[%s2 + $0x90] sm:$0xff]
        %v345 = vld [vmem:[%s2 + $0x98] sm:$0xff]
        %v346 = vld [vmem:[%s2 + $0xa0] sm:$0xff]
        %v347 = vld [vmem:[%s2 + $0xa8] sm:$0xff]
        %v348 = vld [vmem:[%s2 + $0xb0] sm:$0xff]
        %v349 = vld [vmem:[%s2 + $0xb8] sm:$0xff]
        %v350 = vld [vmem:[%s2 + $0xc0] sm:$0xff]
        %v351 = vld [vmem:[%s2 + $0xc8] sm:$0xff]
        %v352 = vld [vmem:[%s2 + $0xd0] sm:$0xff]
        %v353 = vld [vmem:[%s2 + $0xd8] sm:$0xff]
        %v354 = vld [vmem:[%s2 + $0xe0] sm:$0xff]
        %v355 = vld [vmem:[%s2 + $0xe8] sm:$0xff]
        %v356 = vld [vmem:[%s2 + $0xf0] sm:$0xff]
        %v357 = vld [vmem:[%s2 + $0xf8] sm:$0xff]
        %vm358 = vcmask 523264
        %v360 = vsel %vm358, %v294, 0
        %v363 = vsel %vm358, %v295, 0
        %v366 = vsel %vm358, %v296, 0
        %v369 = vsel %vm358, %v297, 0
        %v372 = vsel %vm358, %v298, 0
        %v375 = vsel %vm358, %v299, 0
        %v378 = vsel %vm358, %v300, 0
        %v381 = vsel %vm358, %v301, 0
        %v384 = vsel %vm358, %v302, 0
        %v387 = vsel %vm358, %v303, 0
        %v390 = vsel %vm358, %v304, 0
        %v393 = vsel %vm358, %v305, 0
        %v396 = vsel %vm358, %v306, 0
        %v399 = vsel %vm358, %v307, 0
        %v402 = vsel %vm358, %v308, 0
        %v405 = vsel %vm358, %v309, 0
        %v408 = vsel %vm358, %v310, 0
        %v411 = vsel %vm358, %v311, 0
        %v414 = vsel %vm358, %v312, 0
        %v417 = vsel %vm358, %v313, 0
        %v420 = vsel %vm358, %v314, 0
        %v423 = vsel %vm358, %v315, 0
        %v426 = vsel %vm358, %v316, 0
        %v429 = vsel %vm358, %v317, 0
        %v432 = vsel %vm358, %v318, 0
        %v435 = vsel %vm358, %v319, 0
        %v438 = vsel %vm358, %v320, 0
        %v441 = vsel %vm358, %v321, 0
        %v444 = vsel %vm358, %v322, 0
        %v447 = vsel %vm358, %v323, 0
        %v450 = vsel %vm358, %v324, 0
        %v453 = vsel %vm358, %v325, 0
        %455 = vmatpush.msra.mxu0 0.0
        %456 = vmatpush.msra.mxu0 0.0
        %457 = vmatpush.msra.mxu0 0.0
        %458 = vmatpush.msra.mxu0 0.0
        %459 = vmatpush.msra.mxu0 0.0
        %460 = vmatpush.msra.mxu0 0.0
        %461 = vmatpush.msra.mxu0 0.0
        %462 = vmatpush.msra.mxu0 0.0
        %463 = vmatpush.msra.mxu0 %v292
        %464 = vmatpush.msra.mxu0 %v290
        %465 = vmatpush.msra.mxu0 %v288
        %466 = vmatpush.msra.mxu0 %v286
        %467 = vmatpush.msra.mxu0 %v284
        %468 = vmatpush.msra.mxu0 %v282
        %469 = vmatpush.msra.mxu0 %v280
        %470 = vmatpush.msra.mxu0 %v278
        %471 = vmatmul.f32.gmra.mxu0 %v360
        %v472 = vpop.f32.mrf.mxu0
        %v473 = vadd.f32 0.0, %v472
        %474 = vmatmul.f32.gmra.mxu0 %v363
        %v475 = vpop.f32.mrf.mxu0
        %v476 = vadd.f32 0.0, %v475
        %477 = vmatmul.f32.gmra.mxu0 %v366
        %v478 = vpop.f32.mrf.mxu0
        %v479 = vadd.f32 0.0, %v478
        %480 = vmatmul.f32.gmra.mxu0 %v369
        %v481 = vpop.f32.mrf.mxu0
        %v482 = vadd.f32 0.0, %v481
        %483 = vmatmul.f32.gmra.mxu0 %v372
        %v484 = vpop.f32.mrf.mxu0
        %v485 = vadd.f32 0.0, %v484
        %486 = vmatmul.f32.gmra.mxu0 %v375
        %v487 = vpop.f32.mrf.mxu0
        %v488 = vadd.f32 0.0, %v487
        %489 = vmatmul.f32.gmra.mxu0 %v378
        %v490 = vpop.f32.mrf.mxu0
        %v491 = vadd.f32 0.0, %v490
        %492 = vmatmul.f32.gmra.mxu0 %v381
        %v493 = vpop.f32.mrf.mxu0
        %v494 = vadd.f32 0.0, %v493
        %495 = vmatmul.f32.gmra.mxu0 %v384
        %v496 = vpop.f32.mrf.mxu0
        %v497 = vadd.f32 0.0, %v496
        %498 = vmatmul.f32.gmra.mxu0 %v387
        %v499 = vpop.f32.mrf.mxu0
        %v500 = vadd.f32 0.0, %v499
        %501 = vmatmul.f32.gmra.mxu0 %v390
        %v502 = vpop.f32.mrf.mxu0
        %v503 = vadd.f32 0.0, %v502
        %504 = vmatmul.f32.gmra.mxu0 %v393
        %v505 = vpop.f32.mrf.mxu0
        %v506 = vadd.f32 0.0, %v505
        %507 = vmatmul.f32.gmra.mxu0 %v396
        %v508 = vpop.f32.mrf.mxu0
        %v509 = vadd.f32 0.0, %v508
        %510 = vmatmul.f32.gmra.mxu0 %v399
        %v511 = vpop.f32.mrf.mxu0
        %v512 = vadd.f32 0.0, %v511
        %513 = vmatmul.f32.gmra.mxu0 %v402
        %v514 = vpop.f32.mrf.mxu0
        %v515 = vadd.f32 0.0, %v514
        %516 = vmatmul.f32.gmra.mxu0 %v405
        %v517 = vpop.f32.mrf.mxu0
        %v518 = vadd.f32 0.0, %v517
        %519 = vmatmul.f32.gmra.mxu0 %v408
        %v520 = vpop.f32.mrf.mxu0
        %v521 = vadd.f32 0.0, %v520
        %522 = vmatmul.f32.gmra.mxu0 %v411
        %v523 = vpop.f32.mrf.mxu0
        %v524 = vadd.f32 0.0, %v523
        %525 = vmatmul.f32.gmra.mxu0 %v414
        %v526 = vpop.f32.mrf.mxu0
        %v527 = vadd.f32 0.0, %v526
        %528 = vmatmul.f32.gmra.mxu0 %v417
        %v529 = vpop.f32.mrf.mxu0
        %v530 = vadd.f32 0.0, %v529
        %531 = vmatmul.f32.gmra.mxu0 %v420
        %v532 = vpop.f32.mrf.mxu0
        %v533 = vadd.f32 0.0, %v532
        %534 = vmatmul.f32.gmra.mxu0 %v423
        %v535 = vpop.f32.mrf.mxu0
        %v536 = vadd.f32 0.0, %v535
        %537 = vmatmul.f32.gmra.mxu0 %v426
        %v538 = vpop.f32.mrf.mxu0
        %v539 = vadd.f32 0.0, %v538
        %540 = vmatmul.f32.gmra.mxu0 %v429
        %v541 = vpop.f32.mrf.mxu0
        %v542 = vadd.f32 0.0, %v541
        %543 = vmatmul.f32.gmra.mxu0 %v432
        %v544 = vpop.f32.mrf.mxu0
        %v545 = vadd.f32 0.0, %v544
        %546 = vmatmul.f32.gmra.mxu0 %v435
        %v547 = vpop.f32.mrf.mxu0
        %v548 = vadd.f32 0.0, %v547
        %549 = vmatmul.f32.gmra.mxu0 %v438
        %v550 = vpop.f32.mrf.mxu0
        %v551 = vadd.f32 0.0, %v550
        %552 = vmatmul.f32.gmra.mxu0 %v441
        %v553 = vpop.f32.mrf.mxu0
        %v554 = vadd.f32 0.0, %v553
        %555 = vmatmul.f32.gmra.mxu0 %v444
        %v556 = vpop.f32.mrf.mxu0
        %v557 = vadd.f32 0.0, %v556
        %558 = vmatmul.f32.gmra.mxu0 %v447
        %v559 = vpop.f32.mrf.mxu0
        %v560 = vadd.f32 0.0, %v559
        %561 = vmatmul.f32.gmra.mxu0 %v450
        %v562 = vpop.f32.mrf.mxu0
        %v563 = vadd.f32 0.0, %v562
        %564 = vmatmul.f32.gmra.mxu0 %v453
        %v565 = vpop.f32.mrf.mxu0
        %v566 = vadd.f32 0.0, %v565
        %567 = vdwg.mxu0
        %568 = vmatpush.msra.mxu0 0.0
        %569 = vmatpush.msra.mxu0 0.0
        %570 = vmatpush.msra.mxu0 0.0
        %571 = vmatpush.msra.mxu0 0.0
        %572 = vmatpush.msra.mxu0 0.0
        %573 = vmatpush.msra.mxu0 0.0
        %574 = vmatpush.msra.mxu0 0.0
        %575 = vmatpush.msra.mxu0 0.0
        %576 = vmatpush.msra.mxu0 %v293
        %577 = vmatpush.msra.mxu0 %v291
        %578 = vmatpush.msra.mxu0 %v289
        %579 = vmatpush.msra.mxu0 %v287
        %580 = vmatpush.msra.mxu0 %v285
        %581 = vmatpush.msra.mxu0 %v283
        %582 = vmatpush.msra.mxu0 %v281
        %583 = vmatpush.msra.mxu0 %v279
        %584 = vmatmul.f32.gmra.mxu0 %v360
        %v585 = vpop.f32.mrf.mxu0
        %v586 = vadd.f32 0.0, %v585
        %587 = vmatmul.f32.gmra.mxu0 %v363
        %v588 = vpop.f32.mrf.mxu0
        %v589 = vadd.f32 0.0, %v588
        %590 = vmatmul.f32.gmra.mxu0 %v366
        %v591 = vpop.f32.mrf.mxu0
        %v592 = vadd.f32 0.0, %v591
        %593 = vmatmul.f32.gmra.mxu0 %v369
        %v594 = vpop.f32.mrf.mxu0
        %v595 = vadd.f32 0.0, %v594
        %596 = vmatmul.f32.gmra.mxu0 %v372
        %v597 = vpop.f32.mrf.mxu0
        %v598 = vadd.f32 0.0, %v597
        %599 = vmatmul.f32.gmra.mxu0 %v375
        %v600 = vpop.f32.mrf.mxu0
        %v601 = vadd.f32 0.0, %v600
        %602 = vmatmul.f32.gmra.mxu0 %v378
        %v603 = vpop.f32.mrf.mxu0
        %v604 = vadd.f32 0.0, %v603
        %605 = vmatmul.f32.gmra.mxu0 %v381
        %v606 = vpop.f32.mrf.mxu0
        %v607 = vadd.f32 0.0, %v606
        %608 = vmatmul.f32.gmra.mxu0 %v384
        %v609 = vpop.f32.mrf.mxu0
        %v610 = vadd.f32 0.0, %v609
        %611 = vmatmul.f32.gmra.mxu0 %v387
        %v612 = vpop.f32.mrf.mxu0
        %v613 = vadd.f32 0.0, %v612
        %614 = vmatmul.f32.gmra.mxu0 %v390
        %v615 = vpop.f32.mrf.mxu0
        %v616 = vadd.f32 0.0, %v615
        %617 = vmatmul.f32.gmra.mxu0 %v393
        %v618 = vpop.f32.mrf.mxu0
        %v619 = vadd.f32 0.0, %v618
        %620 = vmatmul.f32.gmra.mxu0 %v396
        %v621 = vpop.f32.mrf.mxu0
        %v622 = vadd.f32 0.0, %v621
        %623 = vmatmul.f32.gmra.mxu0 %v399
        %v624 = vpop.f32.mrf.mxu0
        %v625 = vadd.f32 0.0, %v624
        %626 = vmatmul.f32.gmra.mxu0 %v402
        %v627 = vpop.f32.mrf.mxu0
        %v628 = vadd.f32 0.0, %v627
        %629 = vmatmul.f32.gmra.mxu0 %v405
        %v630 = vpop.f32.mrf.mxu0
        %v631 = vadd.f32 0.0, %v630
        %632 = vmatmul.f32.gmra.mxu0 %v408
        %v633 = vpop.f32.mrf.mxu0
        %v634 = vadd.f32 0.0, %v633
        %635 = vmatmul.f32.gmra.mxu0 %v411
        %v636 = vpop.f32.mrf.mxu0
        %v637 = vadd.f32 0.0, %v636
        %638 = vmatmul.f32.gmra.mxu0 %v414
        %v639 = vpop.f32.mrf.mxu0
        %v640 = vadd.f32 0.0, %v639
        %641 = vmatmul.f32.gmra.mxu0 %v417
        %v642 = vpop.f32.mrf.mxu0
        %v643 = vadd.f32 0.0, %v642
        %644 = vmatmul.f32.gmra.mxu0 %v420
        %v645 = vpop.f32.mrf.mxu0
        %v646 = vadd.f32 0.0, %v645
        %647 = vmatmul.f32.gmra.mxu0 %v423
        %v648 = vpop.f32.mrf.mxu0
        %v649 = vadd.f32 0.0, %v648
        %650 = vmatmul.f32.gmra.mxu0 %v426
        %v651 = vpop.f32.mrf.mxu0
        %v652 = vadd.f32 0.0, %v651
        %653 = vmatmul.f32.gmra.mxu0 %v429
        %v654 = vpop.f32.mrf.mxu0
        %v655 = vadd.f32 0.0, %v654
        %656 = vmatmul.f32.gmra.mxu0 %v432
        %v657 = vpop.f32.mrf.mxu0
        %v658 = vadd.f32 0.0, %v657
        %659 = vmatmul.f32.gmra.mxu0 %v435
        %v660 = vpop.f32.mrf.mxu0
        %v661 = vadd.f32 0.0, %v660
        %662 = vmatmul.f32.gmra.mxu0 %v438
        %v663 = vpop.f32.mrf.mxu0
        %v664 = vadd.f32 0.0, %v663
        %665 = vmatmul.f32.gmra.mxu0 %v441
        %v666 = vpop.f32.mrf.mxu0
        %v667 = vadd.f32 0.0, %v666
        %668 = vmatmul.f32.gmra.mxu0 %v444
        %v669 = vpop.f32.mrf.mxu0
        %v670 = vadd.f32 0.0, %v669
        %671 = vmatmul.f32.gmra.mxu0 %v447
        %v672 = vpop.f32.mrf.mxu0
        %v673 = vadd.f32 0.0, %v672
        %674 = vmatmul.f32.gmra.mxu0 %v450
        %v675 = vpop.f32.mrf.mxu0
        %v676 = vadd.f32 0.0, %v675
        %677 = vmatmul.f32.gmra.mxu0 %v453
        %v678 = vpop.f32.mrf.mxu0
        %v679 = vadd.f32 0.0, %v678
        %680 = vdwg.mxu0
        %v681 = vmul.f32 %v278, %v278
        %v682 = vmul.f32 %v279, %v279
        %v683 = vmul.f32 %v280, %v280
        %v684 = vmul.f32 %v281, %v281
        %v685 = vmul.f32 %v282, %v282
        %v686 = vmul.f32 %v283, %v283
        %v687 = vmul.f32 %v284, %v284
        %v688 = vmul.f32 %v285, %v285
        %v689 = vmul.f32 %v286, %v286
        %v690 = vmul.f32 %v287, %v287
        %v691 = vmul.f32 %v288, %v288
        %v692 = vmul.f32 %v289, %v289
        %v693 = vmul.f32 %v290, %v290
        %v694 = vmul.f32 %v291, %v291
        %v695 = vmul.f32 %v292, %v292
        %v696 = vmul.f32 %v293, %v293
        %v697 = vadd.f32 %v681, %v683
        %v698 = vadd.f32 %v697, %v685
        %v699 = vadd.f32 %v698, %v687
        %v700 = vadd.f32 %v699, %v689
        %v701 = vadd.f32 %v700, %v691
        %v702 = vadd.f32 %v701, %v693
        %v703 = vadd.f32 %v702, %v695
        %v704 = vrot.slane %v703, 4
        %v705 = vadd.f32 %v703, %v704
        %v706 = vrot.slane %v705, 2
        %v707 = vadd.f32 %v705, %v706
        %v708 = vrot.slane %v707, 1
        %v709 = vadd.f32 %v707, %v708
        %v710 = vadd.f32 %v682, %v684
        %v711 = vadd.f32 %v710, %v686
        %v712 = vadd.f32 %v711, %v688
        %v713 = vadd.f32 %v712, %v690
        %v714 = vadd.f32 %v713, %v692
        %v715 = vadd.f32 %v714, %v694
        %v716 = vadd.f32 %v715, %v696
        %v717 = vrot.slane %v716, 4
        %v718 = vadd.f32 %v716, %v717
        %v719 = vrot.slane %v718, 2
        %v720 = vadd.f32 %v718, %v719
        %v721 = vrot.slane %v720, 1
        %v722 = vadd.f32 %v720, %v721
        %724 = vset.pattern.permute.xlu0 0
        %725 = vperm.xlu0 %724, %v326
        %v726 = vpop.permute.xlu0 %725
        %729 = vset.pattern.permute.xlu0 0
        %730 = vperm.xlu0 %729, %v327
        %v731 = vpop.permute.xlu0 %730
        %734 = vset.pattern.permute.xlu0 0
        %735 = vperm.xlu0 %734, %v328
        %v736 = vpop.permute.xlu0 %735
        %739 = vset.pattern.permute.xlu0 0
        %740 = vperm.xlu0 %739, %v329
        %v741 = vpop.permute.xlu0 %740
        %744 = vset.pattern.permute.xlu0 0
        %745 = vperm.xlu0 %744, %v330
        %v746 = vpop.permute.xlu0 %745
        %749 = vset.pattern.permute.xlu0 0
        %750 = vperm.xlu0 %749, %v331
        %v751 = vpop.permute.xlu0 %750
        %754 = vset.pattern.permute.xlu0 0
        %755 = vperm.xlu0 %754, %v332
        %v756 = vpop.permute.xlu0 %755
        %759 = vset.pattern.permute.xlu0 0
        %760 = vperm.xlu0 %759, %v333
        %v761 = vpop.permute.xlu0 %760
        %764 = vset.pattern.permute.xlu0 0
        %765 = vperm.xlu0 %764, %v334
        %v766 = vpop.permute.xlu0 %765
        %769 = vset.pattern.permute.xlu0 0
        %770 = vperm.xlu0 %769, %v335
        %v771 = vpop.permute.xlu0 %770
        %774 = vset.pattern.permute.xlu0 0
        %775 = vperm.xlu0 %774, %v336
        %v776 = vpop.permute.xlu0 %775
        %779 = vset.pattern.permute.xlu0 0
        %780 = vperm.xlu0 %779, %v337
        %v781 = vpop.permute.xlu0 %780
        %784 = vset.pattern.permute.xlu0 0
        %785 = vperm.xlu0 %784, %v338
        %v786 = vpop.permute.xlu0 %785
        %789 = vset.pattern.permute.xlu0 0
        %790 = vperm.xlu0 %789, %v339
        %v791 = vpop.permute.xlu0 %790
        %794 = vset.pattern.permute.xlu0 0
        %795 = vperm.xlu0 %794, %v340
        %v796 = vpop.permute.xlu0 %795
        %799 = vset.pattern.permute.xlu0 0
        %800 = vperm.xlu0 %799, %v341
        %v801 = vpop.permute.xlu0 %800
        %804 = vset.pattern.permute.xlu0 0
        %805 = vperm.xlu0 %804, %v342
        %v806 = vpop.permute.xlu0 %805
        %809 = vset.pattern.permute.xlu0 0
        %810 = vperm.xlu0 %809, %v343
        %v811 = vpop.permute.xlu0 %810
        %814 = vset.pattern.permute.xlu0 0
        %815 = vperm.xlu0 %814, %v344
        %v816 = vpop.permute.xlu0 %815
        %819 = vset.pattern.permute.xlu0 0
        %820 = vperm.xlu0 %819, %v345
        %v821 = vpop.permute.xlu0 %820
        %824 = vset.pattern.permute.xlu0 0
        %825 = vperm.xlu0 %824, %v346
        %v826 = vpop.permute.xlu0 %825
        %829 = vset.pattern.permute.xlu0 0
        %830 = vperm.xlu0 %829, %v347
        %v831 = vpop.permute.xlu0 %830
        %834 = vset.pattern.permute.xlu0 0
        %835 = vperm.xlu0 %834, %v348
        %v836 = vpop.permute.xlu0 %835
        %839 = vset.pattern.permute.xlu0 0
        %840 = vperm.xlu0 %839, %v349
        %v841 = vpop.permute.xlu0 %840
        %844 = vset.pattern.permute.xlu0 0
        %845 = vperm.xlu0 %844, %v350
        %v846 = vpop.permute.xlu0 %845
        %849 = vset.pattern.permute.xlu0 0
        %850 = vperm.xlu0 %849, %v351
        %v851 = vpop.permute.xlu0 %850
        %854 = vset.pattern.permute.xlu0 0
        %855 = vperm.xlu0 %854, %v352
        %v856 = vpop.permute.xlu0 %855
        %859 = vset.pattern.permute.xlu0 0
        %860 = vperm.xlu0 %859, %v353
        %v861 = vpop.permute.xlu0 %860
        %864 = vset.pattern.permute.xlu0 0
        %865 = vperm.xlu0 %864, %v354
        %v866 = vpop.permute.xlu0 %865
        %869 = vset.pattern.permute.xlu0 0
        %870 = vperm.xlu0 %869, %v355
        %v871 = vpop.permute.xlu0 %870
        %874 = vset.pattern.permute.xlu0 0
        %875 = vperm.xlu0 %874, %v356
        %v876 = vpop.permute.xlu0 %875
        %879 = vset.pattern.permute.xlu0 0
        %880 = vperm.xlu0 %879, %v357
        %v881 = vpop.permute.xlu0 %880
        %v883 = vadd.f32 %v709, %v726
        %v884 = vadd.f32 %v722, %v726
        %v885 = vadd.f32 %v709, %v731
        %v886 = vadd.f32 %v722, %v731
        %v887 = vadd.f32 %v709, %v736
        %v888 = vadd.f32 %v722, %v736
        %v889 = vadd.f32 %v709, %v741
        %v890 = vadd.f32 %v722, %v741
        %v891 = vadd.f32 %v709, %v746
        %v892 = vadd.f32 %v722, %v746
        %v893 = vadd.f32 %v709, %v751
        %v894 = vadd.f32 %v722, %v751
        %v895 = vadd.f32 %v709, %v756
        %v896 = vadd.f32 %v722, %v756
        %v897 = vadd.f32 %v709, %v761
        %v898 = vadd.f32 %v722, %v761
        %v899 = vadd.f32 %v709, %v766
        %v900 = vadd.f32 %v722, %v766
        %v901 = vadd.f32 %v709, %v771
        %v902 = vadd.f32 %v722, %v771
        %v903 = vadd.f32 %v709, %v776
        %v904 = vadd.f32 %v722, %v776
        %v905 = vadd.f32 %v709, %v781
        %v906 = vadd.f32 %v722, %v781
        %v907 = vadd.f32 %v709, %v786
        %v908 = vadd.f32 %v722, %v786
        %v909 = vadd.f32 %v709, %v791
        %v910 = vadd.f32 %v722, %v791
        %v911 = vadd.f32 %v709, %v796
        %v912 = vadd.f32 %v722, %v796
        %v913 = vadd.f32 %v709, %v801
        %v914 = vadd.f32 %v722, %v801
        %v915 = vadd.f32 %v709, %v806
        %v916 = vadd.f32 %v722, %v806
        %v917 = vadd.f32 %v709, %v811
        %v918 = vadd.f32 %v722, %v811
        %v919 = vadd.f32 %v709, %v816
        %v920 = vadd.f32 %v722, %v816
        %v921 = vadd.f32 %v709, %v821
        %v922 = vadd.f32 %v722, %v821
        %v923 = vadd.f32 %v709, %v826
        %v924 = vadd.f32 %v722, %v826
        %v925 = vadd.f32 %v709, %v831
        %v926 = vadd.f32 %v722, %v831
        %v927 = vadd.f32 %v709, %v836
        %v928 = vadd.f32 %v722, %v836
        %v929 = vadd.f32 %v709, %v841
        %v930 = vadd.f32 %v722, %v841
        %v931 = vadd.f32 %v709, %v846
        %v932 = vadd.f32 %v722, %v846
        %v933 = vadd.f32 %v709, %v851
        %v934 = vadd.f32 %v722, %v851
        %v935 = vadd.f32 %v709, %v856
        %v936 = vadd.f32 %v722, %v856
        %v937 = vadd.f32 %v709, %v861
        %v938 = vadd.f32 %v722, %v861
        %v939 = vadd.f32 %v709, %v866
        %v940 = vadd.f32 %v722, %v866
        %v941 = vadd.f32 %v709, %v871
        %v942 = vadd.f32 %v722, %v871
        %v943 = vadd.f32 %v709, %v876
        %v944 = vadd.f32 %v722, %v876
        %v945 = vadd.f32 %v709, %v881
        %v946 = vadd.f32 %v722, %v881
        %v947 = vmul.f32 %v473, 2.0
        %v948 = vmul.f32 %v586, 2.0
        %v949 = vmul.f32 %v476, 2.0
        %v950 = vmul.f32 %v589, 2.0
        %v951 = vmul.f32 %v479, 2.0
        %v952 = vmul.f32 %v592, 2.0
        %v953 = vmul.f32 %v482, 2.0
        %v954 = vmul.f32 %v595, 2.0
        %v955 = vmul.f32 %v485, 2.0
        %v956 = vmul.f32 %v598, 2.0
        %v957 = vmul.f32 %v488, 2.0
        %v958 = vmul.f32 %v601, 2.0
        %v959 = vmul.f32 %v491, 2.0
        %v960 = vmul.f32 %v604, 2.0
        %v961 = vmul.f32 %v494, 2.0
        %v962 = vmul.f32 %v607, 2.0
        %v963 = vmul.f32 %v497, 2.0
        %v964 = vmul.f32 %v610, 2.0
        %v965 = vmul.f32 %v500, 2.0
        %v966 = vmul.f32 %v613, 2.0
        %v967 = vmul.f32 %v503, 2.0
        %v968 = vmul.f32 %v616, 2.0
        %v969 = vmul.f32 %v506, 2.0
        %v970 = vmul.f32 %v619, 2.0
        %v971 = vmul.f32 %v509, 2.0
        %v972 = vmul.f32 %v622, 2.0
        %v973 = vmul.f32 %v512, 2.0
        %v974 = vmul.f32 %v625, 2.0
        %v975 = vmul.f32 %v515, 2.0
        %v976 = vmul.f32 %v628, 2.0
        %v977 = vmul.f32 %v518, 2.0
        %v978 = vmul.f32 %v631, 2.0
        %v979 = vmul.f32 %v521, 2.0
        %v980 = vmul.f32 %v634, 2.0
        %v981 = vmul.f32 %v524, 2.0
        %v982 = vmul.f32 %v637, 2.0
        %v983 = vmul.f32 %v527, 2.0
        %v984 = vmul.f32 %v640, 2.0
        %v985 = vmul.f32 %v530, 2.0
        %v986 = vmul.f32 %v643, 2.0
        %v987 = vmul.f32 %v533, 2.0
        %v988 = vmul.f32 %v646, 2.0
        %v989 = vmul.f32 %v536, 2.0
        %v990 = vmul.f32 %v649, 2.0
        %v991 = vmul.f32 %v539, 2.0
        %v992 = vmul.f32 %v652, 2.0
        %v993 = vmul.f32 %v542, 2.0
        %v994 = vmul.f32 %v655, 2.0
        %v995 = vmul.f32 %v545, 2.0
        %v996 = vmul.f32 %v658, 2.0
        %v997 = vmul.f32 %v548, 2.0
        %v998 = vmul.f32 %v661, 2.0
        %v999 = vmul.f32 %v551, 2.0
        %v1000 = vmul.f32 %v664, 2.0
        %v1001 = vmul.f32 %v554, 2.0
        %v1002 = vmul.f32 %v667, 2.0
        %v1003 = vmul.f32 %v557, 2.0
        %v1004 = vmul.f32 %v670, 2.0
        %v1005 = vmul.f32 %v560, 2.0
        %v1006 = vmul.f32 %v673, 2.0
        %v1007 = vmul.f32 %v563, 2.0
        %v1008 = vmul.f32 %v676, 2.0
        %v1009 = vmul.f32 %v566, 2.0
        %v1010 = vmul.f32 %v679, 2.0
        %v1011 = vsub.f32 %v883, %v947
        %v1012 = vsub.f32 %v884, %v948
        %v1013 = vsub.f32 %v885, %v949
        %v1014 = vsub.f32 %v886, %v950
        %v1015 = vsub.f32 %v887, %v951
        %v1016 = vsub.f32 %v888, %v952
        %v1017 = vsub.f32 %v889, %v953
        %v1018 = vsub.f32 %v890, %v954
        %v1019 = vsub.f32 %v891, %v955
        %v1020 = vsub.f32 %v892, %v956
        %v1021 = vsub.f32 %v893, %v957
        %v1022 = vsub.f32 %v894, %v958
        %v1023 = vsub.f32 %v895, %v959
        %v1024 = vsub.f32 %v896, %v960
        %v1025 = vsub.f32 %v897, %v961
        %v1026 = vsub.f32 %v898, %v962
        %v1027 = vsub.f32 %v899, %v963
        %v1028 = vsub.f32 %v900, %v964
        %v1029 = vsub.f32 %v901, %v965
        %v1030 = vsub.f32 %v902, %v966
        %v1031 = vsub.f32 %v903, %v967
        %v1032 = vsub.f32 %v904, %v968
        %v1033 = vsub.f32 %v905, %v969
        %v1034 = vsub.f32 %v906, %v970
        %v1035 = vsub.f32 %v907, %v971
        %v1036 = vsub.f32 %v908, %v972
        %v1037 = vsub.f32 %v909, %v973
        %v1038 = vsub.f32 %v910, %v974
        %v1039 = vsub.f32 %v911, %v975
        %v1040 = vsub.f32 %v912, %v976
        %v1041 = vsub.f32 %v913, %v977
        %v1042 = vsub.f32 %v914, %v978
        %v1043 = vsub.f32 %v915, %v979
        %v1044 = vsub.f32 %v916, %v980
        %v1045 = vsub.f32 %v917, %v981
        %v1046 = vsub.f32 %v918, %v982
        %v1047 = vsub.f32 %v919, %v983
        %v1048 = vsub.f32 %v920, %v984
        %v1049 = vsub.f32 %v921, %v985
        %v1050 = vsub.f32 %v922, %v986
        %v1051 = vsub.f32 %v923, %v987
        %v1052 = vsub.f32 %v924, %v988
        %v1053 = vsub.f32 %v925, %v989
        %v1054 = vsub.f32 %v926, %v990
        %v1055 = vsub.f32 %v927, %v991
        %v1056 = vsub.f32 %v928, %v992
        %v1057 = vsub.f32 %v929, %v993
        %v1058 = vsub.f32 %v930, %v994
        %v1059 = vsub.f32 %v931, %v995
        %v1060 = vsub.f32 %v932, %v996
        %v1061 = vsub.f32 %v933, %v997
        %v1062 = vsub.f32 %v934, %v998
        %v1063 = vsub.f32 %v935, %v999
        %v1064 = vsub.f32 %v936, %v1000
        %v1065 = vsub.f32 %v937, %v1001
        %v1066 = vsub.f32 %v938, %v1002
        %v1067 = vsub.f32 %v939, %v1003
        %v1068 = vsub.f32 %v940, %v1004
        %v1069 = vsub.f32 %v941, %v1005
        %v1070 = vsub.f32 %v942, %v1006
        %v1071 = vsub.f32 %v943, %v1007
        %v1072 = vsub.f32 %v944, %v1008
        %v1073 = vsub.f32 %v945, %v1009
        %v1074 = vsub.f32 %v946, %v1010
        %v1075 = vmin.f32 %v1011, %v1015
        %v1076 = vmin.f32 %v1013, %v1017
        %v1077 = vmin.f32 %v1075, %v1019
        %v1078 = vmin.f32 %v1076, %v1021
        %v1079 = vmin.f32 %v1077, %v1023
        %v1080 = vmin.f32 %v1078, %v1025
        %v1081 = vmin.f32 %v1079, %v1027
        %v1082 = vmin.f32 %v1080, %v1029
        %v1083 = vmin.f32 %v1081, %v1031
        %v1084 = vmin.f32 %v1082, %v1033
        %v1085 = vmin.f32 %v1083, %v1035
        %v1086 = vmin.f32 %v1084, %v1037
        %v1087 = vmin.f32 %v1085, %v1039
        %v1088 = vmin.f32 %v1086, %v1041
        %v1089 = vmin.f32 %v1087, %v1043
        %v1090 = vmin.f32 %v1088, %v1045
        %v1091 = vmin.f32 %v1089, %v1047
        %v1092 = vmin.f32 %v1090, %v1049
        %v1093 = vmin.f32 %v1091, %v1051
        %v1094 = vmin.f32 %v1092, %v1053
        %v1095 = vmin.f32 %v1093, %v1055
        %v1096 = vmin.f32 %v1094, %v1057
        %v1097 = vmin.f32 %v1095, %v1059
        %v1098 = vmin.f32 %v1096, %v1061
        %v1099 = vmin.f32 %v1097, %v1063
        %v1100 = vmin.f32 %v1098, %v1065
        %v1101 = vmin.f32 %v1099, %v1067
        %v1102 = vmin.f32 %v1100, %v1069
        %v1103 = vmin.f32 %v1101, %v1071
        %v1104 = vmin.f32 %v1102, %v1073
        %v1105 = vmin.f32 %v1103, %v1104
        %v1106 = vrot.slane %v1105, 4
        %v1107 = vmin.f32 %v1105, %v1106
        %v1108 = vrot.slane %v1107, 2
        %v1109 = vmin.f32 %v1107, %v1108
        %v1110 = vrot.slane %v1109, 1
        %v1111 = vmin.f32 %v1109, %v1110
        %v1112 = vmin.f32 %v1012, %v1016
        %v1113 = vmin.f32 %v1014, %v1018
        %v1114 = vmin.f32 %v1112, %v1020
        %v1115 = vmin.f32 %v1113, %v1022
        %v1116 = vmin.f32 %v1114, %v1024
        %v1117 = vmin.f32 %v1115, %v1026
        %v1118 = vmin.f32 %v1116, %v1028
        %v1119 = vmin.f32 %v1117, %v1030
        %v1120 = vmin.f32 %v1118, %v1032
        %v1121 = vmin.f32 %v1119, %v1034
        %v1122 = vmin.f32 %v1120, %v1036
        %v1123 = vmin.f32 %v1121, %v1038
        %v1124 = vmin.f32 %v1122, %v1040
        %v1125 = vmin.f32 %v1123, %v1042
        %v1126 = vmin.f32 %v1124, %v1044
        %v1127 = vmin.f32 %v1125, %v1046
        %v1128 = vmin.f32 %v1126, %v1048
        %v1129 = vmin.f32 %v1127, %v1050
        %v1130 = vmin.f32 %v1128, %v1052
        %v1131 = vmin.f32 %v1129, %v1054
        %v1132 = vmin.f32 %v1130, %v1056
        %v1133 = vmin.f32 %v1131, %v1058
        %v1134 = vmin.f32 %v1132, %v1060
        %v1135 = vmin.f32 %v1133, %v1062
        %v1136 = vmin.f32 %v1134, %v1064
        %v1137 = vmin.f32 %v1135, %v1066
        %v1138 = vmin.f32 %v1136, %v1068
        %v1139 = vmin.f32 %v1137, %v1070
        %v1140 = vmin.f32 %v1138, %v1072
        %v1141 = vmin.f32 %v1139, %v1074
        %v1142 = vmin.f32 %v1140, %v1141
        %v1143 = vrot.slane %v1142, 4
        %v1144 = vmin.f32 %v1142, %v1143
        %v1145 = vrot.slane %v1144, 2
        %v1146 = vmin.f32 %v1144, %v1145
        %v1147 = vrot.slane %v1146, 1
        %v1148 = vmin.f32 %v1146, %v1147
        %v1149 = vlaneseq
        %v1150 = vshrl.u32 %v1149, 7
        %v1151 = vadd.s32 %v1150, 8
        %v1152 = vadd.s32 %v1150, 16
        %v1153 = vadd.s32 %v1150, 24
        %v1154 = vadd.s32 %v1150, 32
        %v1155 = vadd.s32 %v1150, 40
        %v1156 = vadd.s32 %v1150, 48
        %v1157 = vadd.s32 %v1150, 56
        %v1158 = vadd.s32 %v1150, 64
        %v1159 = vadd.s32 %v1150, 72
        %v1160 = vadd.s32 %v1150, 80
        %v1161 = vadd.s32 %v1150, 88
        %v1162 = vadd.s32 %v1150, 96
        %v1163 = vadd.s32 %v1150, 104
        %v1164 = vadd.s32 %v1150, 112
        %v1165 = vadd.s32 %v1150, 120
        %v1166 = vadd.s32 %v1150, 128
        %v1167 = vadd.s32 %v1150, 136
        %v1168 = vadd.s32 %v1150, 144
        %v1169 = vadd.s32 %v1150, 152
        %v1170 = vadd.s32 %v1150, 160
        %v1171 = vadd.s32 %v1150, 168
        %v1172 = vadd.s32 %v1150, 176
        %v1173 = vadd.s32 %v1150, 184
        %v1174 = vadd.s32 %v1150, 192
        %v1175 = vadd.s32 %v1150, 200
        %v1176 = vadd.s32 %v1150, 208
        %v1177 = vadd.s32 %v1150, 216
        %v1178 = vadd.s32 %v1150, 224
        %v1179 = vadd.s32 %v1150, 232
        %v1180 = vadd.s32 %v1150, 240
        %v1181 = vadd.s32 %v1150, 248
        %vm1182 = vcmp.le.f32.partialorder %v1011, %v1111
        %vm1183 = vcmp.le.f32.partialorder %v1012, %v1148
        %vm1184 = vcmp.le.f32.partialorder %v1013, %v1111
        %vm1185 = vcmp.le.f32.partialorder %v1014, %v1148
        %vm1186 = vcmp.le.f32.partialorder %v1015, %v1111
        %vm1187 = vcmp.le.f32.partialorder %v1016, %v1148
        %vm1188 = vcmp.le.f32.partialorder %v1017, %v1111
        %vm1189 = vcmp.le.f32.partialorder %v1018, %v1148
        %vm1190 = vcmp.le.f32.partialorder %v1019, %v1111
        %vm1191 = vcmp.le.f32.partialorder %v1020, %v1148
        %vm1192 = vcmp.le.f32.partialorder %v1021, %v1111
        %vm1193 = vcmp.le.f32.partialorder %v1022, %v1148
        %vm1194 = vcmp.le.f32.partialorder %v1023, %v1111
        %vm1195 = vcmp.le.f32.partialorder %v1024, %v1148
        %vm1196 = vcmp.le.f32.partialorder %v1025, %v1111
        %vm1197 = vcmp.le.f32.partialorder %v1026, %v1148
        %vm1198 = vcmp.le.f32.partialorder %v1027, %v1111
        %vm1199 = vcmp.le.f32.partialorder %v1028, %v1148
        %vm1200 = vcmp.le.f32.partialorder %v1029, %v1111
        %vm1201 = vcmp.le.f32.partialorder %v1030, %v1148
        %vm1202 = vcmp.le.f32.partialorder %v1031, %v1111
        %vm1203 = vcmp.le.f32.partialorder %v1032, %v1148
        %vm1204 = vcmp.le.f32.partialorder %v1033, %v1111
        %vm1205 = vcmp.le.f32.partialorder %v1034, %v1148
        %vm1206 = vcmp.le.f32.partialorder %v1035, %v1111
        %vm1207 = vcmp.le.f32.partialorder %v1036, %v1148
        %vm1208 = vcmp.le.f32.partialorder %v1037, %v1111
        %vm1209 = vcmp.le.f32.partialorder %v1038, %v1148
        %vm1210 = vcmp.le.f32.partialorder %v1039, %v1111
        %vm1211 = vcmp.le.f32.partialorder %v1040, %v1148
        %vm1212 = vcmp.le.f32.partialorder %v1041, %v1111
        %vm1213 = vcmp.le.f32.partialorder %v1042, %v1148
        %vm1214 = vcmp.le.f32.partialorder %v1043, %v1111
        %vm1215 = vcmp.le.f32.partialorder %v1044, %v1148
        %vm1216 = vcmp.le.f32.partialorder %v1045, %v1111
        %vm1217 = vcmp.le.f32.partialorder %v1046, %v1148
        %vm1218 = vcmp.le.f32.partialorder %v1047, %v1111
        %vm1219 = vcmp.le.f32.partialorder %v1048, %v1148
        %vm1220 = vcmp.le.f32.partialorder %v1049, %v1111
        %vm1221 = vcmp.le.f32.partialorder %v1050, %v1148
        %vm1222 = vcmp.le.f32.partialorder %v1051, %v1111
        %vm1223 = vcmp.le.f32.partialorder %v1052, %v1148
        %vm1224 = vcmp.le.f32.partialorder %v1053, %v1111
        %vm1225 = vcmp.le.f32.partialorder %v1054, %v1148
        %vm1226 = vcmp.le.f32.partialorder %v1055, %v1111
        %vm1227 = vcmp.le.f32.partialorder %v1056, %v1148
        %vm1228 = vcmp.le.f32.partialorder %v1057, %v1111
        %vm1229 = vcmp.le.f32.partialorder %v1058, %v1148
        %vm1230 = vcmp.le.f32.partialorder %v1059, %v1111
        %vm1231 = vcmp.le.f32.partialorder %v1060, %v1148
        %vm1232 = vcmp.le.f32.partialorder %v1061, %v1111
        %vm1233 = vcmp.le.f32.partialorder %v1062, %v1148
        %vm1234 = vcmp.le.f32.partialorder %v1063, %v1111
        %vm1235 = vcmp.le.f32.partialorder %v1064, %v1148
        %vm1236 = vcmp.le.f32.partialorder %v1065, %v1111
        %vm1237 = vcmp.le.f32.partialorder %v1066, %v1148
        %vm1238 = vcmp.le.f32.partialorder %v1067, %v1111
        %vm1239 = vcmp.le.f32.partialorder %v1068, %v1148
        %vm1240 = vcmp.le.f32.partialorder %v1069, %v1111
        %vm1241 = vcmp.le.f32.partialorder %v1070, %v1148
        %vm1242 = vcmp.le.f32.partialorder %v1071, %v1111
        %vm1243 = vcmp.le.f32.partialorder %v1072, %v1148
        %vm1244 = vcmp.le.f32.partialorder %v1073, %v1111
        %vm1245 = vcmp.le.f32.partialorder %v1074, %v1148
        %v1246 = vsel %vm1182, %v1150, 256
        %v1247 = vsel %vm1183, %v1150, 256
        %v1248 = vsel %vm1184, %v1151, 256
        %v1249 = vsel %vm1185, %v1151, 256
        %v1250 = vsel %vm1186, %v1152, 256
        %v1251 = vsel %vm1187, %v1152, 256
        %v1252 = vsel %vm1188, %v1153, 256
        %v1253 = vsel %vm1189, %v1153, 256
        %v1254 = vsel %vm1190, %v1154, 256
        %v1255 = vsel %vm1191, %v1154, 256
        %v1256 = vsel %vm1192, %v1155, 256
        %v1257 = vsel %vm1193, %v1155, 256
        %v1258 = vsel %vm1194, %v1156, 256
        %v1259 = vsel %vm1195, %v1156, 256
        %v1260 = vsel %vm1196, %v1157, 256
        %v1261 = vsel %vm1197, %v1157, 256
        %v1262 = vsel %vm1198, %v1158, 256
        %v1263 = vsel %vm1199, %v1158, 256
        %v1264 = vsel %vm1200, %v1159, 256
        %v1265 = vsel %vm1201, %v1159, 256
        %v1266 = vsel %vm1202, %v1160, 256
        %v1267 = vsel %vm1203, %v1160, 256
        %v1268 = vsel %vm1204, %v1161, 256
        %v1269 = vsel %vm1205, %v1161, 256
        %v1270 = vsel %vm1206, %v1162, 256
        %v1271 = vsel %vm1207, %v1162, 256
        %v1272 = vsel %vm1208, %v1163, 256
        %v1273 = vsel %vm1209, %v1163, 256
        %v1274 = vsel %vm1210, %v1164, 256
        %v1275 = vsel %vm1211, %v1164, 256
        %v1276 = vsel %vm1212, %v1165, 256
        %v1277 = vsel %vm1213, %v1165, 256
        %v1278 = vsel %vm1214, %v1166, 256
        %v1279 = vsel %vm1215, %v1166, 256
        %v1280 = vsel %vm1216, %v1167, 256
        %v1281 = vsel %vm1217, %v1167, 256
        %v1282 = vsel %vm1218, %v1168, 256
        %v1283 = vsel %vm1219, %v1168, 256
        %v1284 = vsel %vm1220, %v1169, 256
        %v1285 = vsel %vm1221, %v1169, 256
        %v1286 = vsel %vm1222, %v1170, 256
        %v1287 = vsel %vm1223, %v1170, 256
        %v1288 = vsel %vm1224, %v1171, 256
        %v1289 = vsel %vm1225, %v1171, 256
        %v1290 = vsel %vm1226, %v1172, 256
        %v1291 = vsel %vm1227, %v1172, 256
        %v1292 = vsel %vm1228, %v1173, 256
        %v1293 = vsel %vm1229, %v1173, 256
        %v1294 = vsel %vm1230, %v1174, 256
        %v1295 = vsel %vm1231, %v1174, 256
        %v1296 = vsel %vm1232, %v1175, 256
        %v1297 = vsel %vm1233, %v1175, 256
        %v1298 = vsel %vm1234, %v1176, 256
        %v1299 = vsel %vm1235, %v1176, 256
        %v1300 = vsel %vm1236, %v1177, 256
        %v1301 = vsel %vm1237, %v1177, 256
        %v1302 = vsel %vm1238, %v1178, 256
        %v1303 = vsel %vm1239, %v1178, 256
        %v1304 = vsel %vm1240, %v1179, 256
        %v1305 = vsel %vm1241, %v1179, 256
        %v1306 = vsel %vm1242, %v1180, 256
        %v1307 = vsel %vm1243, %v1180, 256
        %v1308 = vsel %vm1244, %v1181, 256
        %v1309 = vsel %vm1245, %v1181, 256
        %vm1310 = vcmp.lt.s32.totalorder %v1246, %v1250
        %v1311 = vsel %vm1310, %v1246, %v1250
        %vm1312 = vcmp.lt.s32.totalorder %v1248, %v1252
        %v1313 = vsel %vm1312, %v1248, %v1252
        %vm1314 = vcmp.lt.s32.totalorder %v1311, %v1254
        %v1315 = vsel %vm1314, %v1311, %v1254
        %vm1316 = vcmp.lt.s32.totalorder %v1313, %v1256
        %v1317 = vsel %vm1316, %v1313, %v1256
        %vm1318 = vcmp.lt.s32.totalorder %v1315, %v1258
        %v1319 = vsel %vm1318, %v1315, %v1258
        %vm1320 = vcmp.lt.s32.totalorder %v1317, %v1260
        %v1321 = vsel %vm1320, %v1317, %v1260
        %vm1322 = vcmp.lt.s32.totalorder %v1319, %v1262
        %v1323 = vsel %vm1322, %v1319, %v1262
        %vm1324 = vcmp.lt.s32.totalorder %v1321, %v1264
        %v1325 = vsel %vm1324, %v1321, %v1264
        %vm1326 = vcmp.lt.s32.totalorder %v1323, %v1266
        %v1327 = vsel %vm1326, %v1323, %v1266
        %vm1328 = vcmp.lt.s32.totalorder %v1325, %v1268
        %v1329 = vsel %vm1328, %v1325, %v1268
        %vm1330 = vcmp.lt.s32.totalorder %v1327, %v1270
        %v1331 = vsel %vm1330, %v1327, %v1270
        %vm1332 = vcmp.lt.s32.totalorder %v1329, %v1272
        %v1333 = vsel %vm1332, %v1329, %v1272
        %vm1334 = vcmp.lt.s32.totalorder %v1331, %v1274
        %v1335 = vsel %vm1334, %v1331, %v1274
        %vm1336 = vcmp.lt.s32.totalorder %v1333, %v1276
        %v1337 = vsel %vm1336, %v1333, %v1276
        %vm1338 = vcmp.lt.s32.totalorder %v1335, %v1278
        %v1339 = vsel %vm1338, %v1335, %v1278
        %vm1340 = vcmp.lt.s32.totalorder %v1337, %v1280
        %v1341 = vsel %vm1340, %v1337, %v1280
        %vm1342 = vcmp.lt.s32.totalorder %v1339, %v1282
        %v1343 = vsel %vm1342, %v1339, %v1282
        %vm1344 = vcmp.lt.s32.totalorder %v1341, %v1284
        %v1345 = vsel %vm1344, %v1341, %v1284
        %vm1346 = vcmp.lt.s32.totalorder %v1343, %v1286
        %v1347 = vsel %vm1346, %v1343, %v1286
        %vm1348 = vcmp.lt.s32.totalorder %v1345, %v1288
        %v1349 = vsel %vm1348, %v1345, %v1288
        %vm1350 = vcmp.lt.s32.totalorder %v1347, %v1290
        %v1351 = vsel %vm1350, %v1347, %v1290
        %vm1352 = vcmp.lt.s32.totalorder %v1349, %v1292
        %v1353 = vsel %vm1352, %v1349, %v1292
        %vm1354 = vcmp.lt.s32.totalorder %v1351, %v1294
        %v1355 = vsel %vm1354, %v1351, %v1294
        %vm1356 = vcmp.lt.s32.totalorder %v1353, %v1296
        %v1357 = vsel %vm1356, %v1353, %v1296
        %vm1358 = vcmp.lt.s32.totalorder %v1355, %v1298
        %v1359 = vsel %vm1358, %v1355, %v1298
        %vm1360 = vcmp.lt.s32.totalorder %v1357, %v1300
        %v1361 = vsel %vm1360, %v1357, %v1300
        %vm1362 = vcmp.lt.s32.totalorder %v1359, %v1302
        %v1363 = vsel %vm1362, %v1359, %v1302
        %vm1364 = vcmp.lt.s32.totalorder %v1361, %v1304
        %v1365 = vsel %vm1364, %v1361, %v1304
        %vm1366 = vcmp.lt.s32.totalorder %v1363, %v1306
        %v1367 = vsel %vm1366, %v1363, %v1306
        %vm1368 = vcmp.lt.s32.totalorder %v1365, %v1308
        %v1369 = vsel %vm1368, %v1365, %v1308
        %vm1370 = vcmp.lt.s32.totalorder %v1367, %v1369
        %v1371 = vsel %vm1370, %v1367, %v1369
        %v1372 = vrot.slane %v1371, 4
        %vm1373 = vcmp.lt.s32.totalorder %v1371, %v1372
        %v1374 = vsel %vm1373, %v1371, %v1372
        %v1375 = vrot.slane %v1374, 2
        %vm1376 = vcmp.lt.s32.totalorder %v1374, %v1375
        %v1377 = vsel %vm1376, %v1374, %v1375
        %v1378 = vrot.slane %v1377, 1
        %vm1379 = vcmp.lt.s32.totalorder %v1377, %v1378
        %v1380 = vsel %vm1379, %v1377, %v1378
        %vm1381 = vcmp.lt.s32.totalorder %v1247, %v1251
        %v1382 = vsel %vm1381, %v1247, %v1251
        %vm1383 = vcmp.lt.s32.totalorder %v1249, %v1253
        %v1384 = vsel %vm1383, %v1249, %v1253
        %vm1385 = vcmp.lt.s32.totalorder %v1382, %v1255
        %v1386 = vsel %vm1385, %v1382, %v1255
        %vm1387 = vcmp.lt.s32.totalorder %v1384, %v1257
        %v1388 = vsel %vm1387, %v1384, %v1257
        %vm1389 = vcmp.lt.s32.totalorder %v1386, %v1259
        %v1390 = vsel %vm1389, %v1386, %v1259
        %vm1391 = vcmp.lt.s32.totalorder %v1388, %v1261
        %v1392 = vsel %vm1391, %v1388, %v1261
        %vm1393 = vcmp.lt.s32.totalorder %v1390, %v1263
        %v1394 = vsel %vm1393, %v1390, %v1263
        %vm1395 = vcmp.lt.s32.totalorder %v1392, %v1265
        %v1396 = vsel %vm1395, %v1392, %v1265
        %vm1397 = vcmp.lt.s32.totalorder %v1394, %v1267
        %v1398 = vsel %vm1397, %v1394, %v1267
        %vm1399 = vcmp.lt.s32.totalorder %v1396, %v1269
        %v1400 = vsel %vm1399, %v1396, %v1269
        %vm1401 = vcmp.lt.s32.totalorder %v1398, %v1271
        %v1402 = vsel %vm1401, %v1398, %v1271
        %vm1403 = vcmp.lt.s32.totalorder %v1400, %v1273
        %v1404 = vsel %vm1403, %v1400, %v1273
        %vm1405 = vcmp.lt.s32.totalorder %v1402, %v1275
        %v1406 = vsel %vm1405, %v1402, %v1275
        %vm1407 = vcmp.lt.s32.totalorder %v1404, %v1277
        %v1408 = vsel %vm1407, %v1404, %v1277
        %vm1409 = vcmp.lt.s32.totalorder %v1406, %v1279
        %v1410 = vsel %vm1409, %v1406, %v1279
        %vm1411 = vcmp.lt.s32.totalorder %v1408, %v1281
        %v1412 = vsel %vm1411, %v1408, %v1281
        %vm1413 = vcmp.lt.s32.totalorder %v1410, %v1283
        %v1414 = vsel %vm1413, %v1410, %v1283
        %vm1415 = vcmp.lt.s32.totalorder %v1412, %v1285
        %v1416 = vsel %vm1415, %v1412, %v1285
        %vm1417 = vcmp.lt.s32.totalorder %v1414, %v1287
        %v1418 = vsel %vm1417, %v1414, %v1287
        %vm1419 = vcmp.lt.s32.totalorder %v1416, %v1289
        %v1420 = vsel %vm1419, %v1416, %v1289
        %vm1421 = vcmp.lt.s32.totalorder %v1418, %v1291
        %v1422 = vsel %vm1421, %v1418, %v1291
        %vm1423 = vcmp.lt.s32.totalorder %v1420, %v1293
        %v1424 = vsel %vm1423, %v1420, %v1293
        %vm1425 = vcmp.lt.s32.totalorder %v1422, %v1295
        %v1426 = vsel %vm1425, %v1422, %v1295
        %vm1427 = vcmp.lt.s32.totalorder %v1424, %v1297
        %v1428 = vsel %vm1427, %v1424, %v1297
        %vm1429 = vcmp.lt.s32.totalorder %v1426, %v1299
        %v1430 = vsel %vm1429, %v1426, %v1299
        %vm1431 = vcmp.lt.s32.totalorder %v1428, %v1301
        %v1432 = vsel %vm1431, %v1428, %v1301
        %vm1433 = vcmp.lt.s32.totalorder %v1430, %v1303
        %v1434 = vsel %vm1433, %v1430, %v1303
        %vm1435 = vcmp.lt.s32.totalorder %v1432, %v1305
        %v1436 = vsel %vm1435, %v1432, %v1305
        %vm1437 = vcmp.lt.s32.totalorder %v1434, %v1307
        %v1438 = vsel %vm1437, %v1434, %v1307
        %vm1439 = vcmp.lt.s32.totalorder %v1436, %v1309
        %v1440 = vsel %vm1439, %v1436, %v1309
        %vm1441 = vcmp.lt.s32.totalorder %v1438, %v1440
        %v1442 = vsel %vm1441, %v1438, %v1440
        %v1443 = vrot.slane %v1442, 4
        %vm1444 = vcmp.lt.s32.totalorder %v1442, %v1443
        %v1445 = vsel %vm1444, %v1442, %v1443
        %v1446 = vrot.slane %v1445, 2
        %vm1447 = vcmp.lt.s32.totalorder %v1445, %v1446
        %v1448 = vsel %vm1447, %v1445, %v1446
        %v1449 = vrot.slane %v1448, 1
        %vm1450 = vcmp.lt.s32.totalorder %v1448, %v1449
        %v1451 = vsel %vm1450, %v1448, %v1449
        %vm1452 = vcmp.eq.s32.totalorder %v1150, %v1380
        %vm1453 = vcmp.eq.s32.totalorder %v1150, %v1451
        %vm1454 = vcmp.eq.s32.totalorder %v1151, %v1380
        %vm1455 = vcmp.eq.s32.totalorder %v1151, %v1451
        %vm1456 = vcmp.eq.s32.totalorder %v1152, %v1380
        %vm1457 = vcmp.eq.s32.totalorder %v1152, %v1451
        %vm1458 = vcmp.eq.s32.totalorder %v1153, %v1380
        %vm1459 = vcmp.eq.s32.totalorder %v1153, %v1451
        %vm1460 = vcmp.eq.s32.totalorder %v1154, %v1380
        %vm1461 = vcmp.eq.s32.totalorder %v1154, %v1451
        %vm1462 = vcmp.eq.s32.totalorder %v1155, %v1380
        %vm1463 = vcmp.eq.s32.totalorder %v1155, %v1451
        %vm1464 = vcmp.eq.s32.totalorder %v1156, %v1380
        %vm1465 = vcmp.eq.s32.totalorder %v1156, %v1451
        %vm1466 = vcmp.eq.s32.totalorder %v1157, %v1380
        %vm1467 = vcmp.eq.s32.totalorder %v1157, %v1451
        %vm1468 = vcmp.eq.s32.totalorder %v1158, %v1380
        %vm1469 = vcmp.eq.s32.totalorder %v1158, %v1451
        %vm1470 = vcmp.eq.s32.totalorder %v1159, %v1380
        %vm1471 = vcmp.eq.s32.totalorder %v1159, %v1451
        %vm1472 = vcmp.eq.s32.totalorder %v1160, %v1380
        %vm1473 = vcmp.eq.s32.totalorder %v1160, %v1451
        %vm1474 = vcmp.eq.s32.totalorder %v1161, %v1380
        %vm1475 = vcmp.eq.s32.totalorder %v1161, %v1451
        %vm1476 = vcmp.eq.s32.totalorder %v1162, %v1380
        %vm1477 = vcmp.eq.s32.totalorder %v1162, %v1451
        %vm1478 = vcmp.eq.s32.totalorder %v1163, %v1380
        %vm1479 = vcmp.eq.s32.totalorder %v1163, %v1451
        %vm1480 = vcmp.eq.s32.totalorder %v1164, %v1380
        %vm1481 = vcmp.eq.s32.totalorder %v1164, %v1451
        %vm1482 = vcmp.eq.s32.totalorder %v1165, %v1380
        %vm1483 = vcmp.eq.s32.totalorder %v1165, %v1451
        %vm1484 = vcmp.eq.s32.totalorder %v1166, %v1380
        %vm1485 = vcmp.eq.s32.totalorder %v1166, %v1451
        %vm1486 = vcmp.eq.s32.totalorder %v1167, %v1380
        %vm1487 = vcmp.eq.s32.totalorder %v1167, %v1451
        %vm1488 = vcmp.eq.s32.totalorder %v1168, %v1380
        %vm1489 = vcmp.eq.s32.totalorder %v1168, %v1451
        %vm1490 = vcmp.eq.s32.totalorder %v1169, %v1380
        %vm1491 = vcmp.eq.s32.totalorder %v1169, %v1451
        %vm1492 = vcmp.eq.s32.totalorder %v1170, %v1380
        %vm1493 = vcmp.eq.s32.totalorder %v1170, %v1451
        %vm1494 = vcmp.eq.s32.totalorder %v1171, %v1380
        %vm1495 = vcmp.eq.s32.totalorder %v1171, %v1451
        %vm1496 = vcmp.eq.s32.totalorder %v1172, %v1380
        %vm1497 = vcmp.eq.s32.totalorder %v1172, %v1451
        %vm1498 = vcmp.eq.s32.totalorder %v1173, %v1380
        %vm1499 = vcmp.eq.s32.totalorder %v1173, %v1451
        %vm1500 = vcmp.eq.s32.totalorder %v1174, %v1380
        %vm1501 = vcmp.eq.s32.totalorder %v1174, %v1451
        %vm1502 = vcmp.eq.s32.totalorder %v1175, %v1380
        %vm1503 = vcmp.eq.s32.totalorder %v1175, %v1451
        %vm1504 = vcmp.eq.s32.totalorder %v1176, %v1380
        %vm1505 = vcmp.eq.s32.totalorder %v1176, %v1451
        %vm1506 = vcmp.eq.s32.totalorder %v1177, %v1380
        %vm1507 = vcmp.eq.s32.totalorder %v1177, %v1451
        %vm1508 = vcmp.eq.s32.totalorder %v1178, %v1380
        %vm1509 = vcmp.eq.s32.totalorder %v1178, %v1451
        %vm1510 = vcmp.eq.s32.totalorder %v1179, %v1380
        %vm1511 = vcmp.eq.s32.totalorder %v1179, %v1451
        %vm1512 = vcmp.eq.s32.totalorder %v1180, %v1380
        %vm1513 = vcmp.eq.s32.totalorder %v1180, %v1451
        %vm1514 = vcmp.eq.s32.totalorder %v1181, %v1380
        %vm1515 = vcmp.eq.s32.totalorder %v1181, %v1451
        %v1516 = vsel %vm1452, 1, 0
        %v1517 = vsel %vm1453, 1, 0
        %v1518 = vsel %vm1454, 1, 0
        %v1519 = vsel %vm1455, 1, 0
        %v1520 = vsel %vm1456, 1, 0
        %v1521 = vsel %vm1457, 1, 0
        %v1522 = vsel %vm1458, 1, 0
        %v1523 = vsel %vm1459, 1, 0
        %v1524 = vsel %vm1460, 1, 0
        %v1525 = vsel %vm1461, 1, 0
        %v1526 = vsel %vm1462, 1, 0
        %v1527 = vsel %vm1463, 1, 0
        %v1528 = vsel %vm1464, 1, 0
        %v1529 = vsel %vm1465, 1, 0
        %v1530 = vsel %vm1466, 1, 0
        %v1531 = vsel %vm1467, 1, 0
        %v1532 = vsel %vm1468, 1, 0
        %v1533 = vsel %vm1469, 1, 0
        %v1534 = vsel %vm1470, 1, 0
        %v1535 = vsel %vm1471, 1, 0
        %v1536 = vsel %vm1472, 1, 0
        %v1537 = vsel %vm1473, 1, 0
        %v1538 = vsel %vm1474, 1, 0
        %v1539 = vsel %vm1475, 1, 0
        %v1540 = vsel %vm1476, 1, 0
        %v1541 = vsel %vm1477, 1, 0
        %v1542 = vsel %vm1478, 1, 0
        %v1543 = vsel %vm1479, 1, 0
        %v1544 = vsel %vm1480, 1, 0
        %v1545 = vsel %vm1481, 1, 0
        %v1546 = vsel %vm1482, 1, 0
        %v1547 = vsel %vm1483, 1, 0
        %v1548 = vsel %vm1484, 1, 0
        %v1549 = vsel %vm1485, 1, 0
        %v1550 = vsel %vm1486, 1, 0
        %v1551 = vsel %vm1487, 1, 0
        %v1552 = vsel %vm1488, 1, 0
        %v1553 = vsel %vm1489, 1, 0
        %v1554 = vsel %vm1490, 1, 0
        %v1555 = vsel %vm1491, 1, 0
        %v1556 = vsel %vm1492, 1, 0
        %v1557 = vsel %vm1493, 1, 0
        %v1558 = vsel %vm1494, 1, 0
        %v1559 = vsel %vm1495, 1, 0
        %v1560 = vsel %vm1496, 1, 0
        %v1561 = vsel %vm1497, 1, 0
        %v1562 = vsel %vm1498, 1, 0
        %v1563 = vsel %vm1499, 1, 0
        %v1564 = vsel %vm1500, 1, 0
        %v1565 = vsel %vm1501, 1, 0
        %v1566 = vsel %vm1502, 1, 0
        %v1567 = vsel %vm1503, 1, 0
        %v1568 = vsel %vm1504, 1, 0
        %v1569 = vsel %vm1505, 1, 0
        %v1570 = vsel %vm1506, 1, 0
        %v1571 = vsel %vm1507, 1, 0
        %v1572 = vsel %vm1508, 1, 0
        %v1573 = vsel %vm1509, 1, 0
        %v1574 = vsel %vm1510, 1, 0
        %v1575 = vsel %vm1511, 1, 0
        %v1576 = vsel %vm1512, 1, 0
        %v1577 = vsel %vm1513, 1, 0
        %v1578 = vsel %vm1514, 1, 0
        %v1579 = vsel %vm1515, 1, 0
        %v1580 = vcvt.s32.f32 %v1516
        %v1581 = vcvt.s32.f32 %v1517
        %v1582 = vcvt.s32.f32 %v1518
        %v1583 = vcvt.s32.f32 %v1519
        %v1584 = vcvt.s32.f32 %v1520
        %v1585 = vcvt.s32.f32 %v1521
        %v1586 = vcvt.s32.f32 %v1522
        %v1587 = vcvt.s32.f32 %v1523
        %v1588 = vcvt.s32.f32 %v1524
        %v1589 = vcvt.s32.f32 %v1525
        %v1590 = vcvt.s32.f32 %v1526
        %v1591 = vcvt.s32.f32 %v1527
        %v1592 = vcvt.s32.f32 %v1528
        %v1593 = vcvt.s32.f32 %v1529
        %v1594 = vcvt.s32.f32 %v1530
        %v1595 = vcvt.s32.f32 %v1531
        %v1596 = vcvt.s32.f32 %v1532
        %v1597 = vcvt.s32.f32 %v1533
        %v1598 = vcvt.s32.f32 %v1534
        %v1599 = vcvt.s32.f32 %v1535
        %v1600 = vcvt.s32.f32 %v1536
        %v1601 = vcvt.s32.f32 %v1537
        %v1602 = vcvt.s32.f32 %v1538
        %v1603 = vcvt.s32.f32 %v1539
        %v1604 = vcvt.s32.f32 %v1540
        %v1605 = vcvt.s32.f32 %v1541
        %v1606 = vcvt.s32.f32 %v1542
        %v1607 = vcvt.s32.f32 %v1543
        %v1608 = vcvt.s32.f32 %v1544
        %v1609 = vcvt.s32.f32 %v1545
        %v1610 = vcvt.s32.f32 %v1546
        %v1611 = vcvt.s32.f32 %v1547
        %v1612 = vcvt.s32.f32 %v1548
        %v1613 = vcvt.s32.f32 %v1549
        %v1614 = vcvt.s32.f32 %v1550
        %v1615 = vcvt.s32.f32 %v1551
        %v1616 = vcvt.s32.f32 %v1552
        %v1617 = vcvt.s32.f32 %v1553
        %v1618 = vcvt.s32.f32 %v1554
        %v1619 = vcvt.s32.f32 %v1555
        %v1620 = vcvt.s32.f32 %v1556
        %v1621 = vcvt.s32.f32 %v1557
        %v1622 = vcvt.s32.f32 %v1558
        %v1623 = vcvt.s32.f32 %v1559
        %v1624 = vcvt.s32.f32 %v1560
        %v1625 = vcvt.s32.f32 %v1561
        %v1626 = vcvt.s32.f32 %v1562
        %v1627 = vcvt.s32.f32 %v1563
        %v1628 = vcvt.s32.f32 %v1564
        %v1629 = vcvt.s32.f32 %v1565
        %v1630 = vcvt.s32.f32 %v1566
        %v1631 = vcvt.s32.f32 %v1567
        %v1632 = vcvt.s32.f32 %v1568
        %v1633 = vcvt.s32.f32 %v1569
        %v1634 = vcvt.s32.f32 %v1570
        %v1635 = vcvt.s32.f32 %v1571
        %v1636 = vcvt.s32.f32 %v1572
        %v1637 = vcvt.s32.f32 %v1573
        %v1638 = vcvt.s32.f32 %v1574
        %v1639 = vcvt.s32.f32 %v1575
        %v1640 = vcvt.s32.f32 %v1576
        %v1641 = vcvt.s32.f32 %v1577
        %v1642 = vcvt.s32.f32 %v1578
        %v1643 = vcvt.s32.f32 %v1579
        %1644 = vxpose.xlu0.b32.start [1/16] %v294, 128
        %1645 = vxpose.xlu0.b32.cont [2/16] %v295, 128
        %1646 = vxpose.xlu0.b32.cont [3/16] %v296, 128
        %1647 = vxpose.xlu0.b32.cont [4/16] %v297, 128
        %1648 = vxpose.xlu0.b32.cont [5/16] %v298, 128
        %1649 = vxpose.xlu0.b32.cont [6/16] %v299, 128
        %1650 = vxpose.xlu0.b32.cont [7/16] %v300, 128
        %1651 = vxpose.xlu0.b32.cont [8/16] %v301, 128
        %1652 = vxpose.xlu0.b32.cont [9/16] %v302, 128
        %1653 = vxpose.xlu0.b32.cont [10/16] %v303, 128
        %1654 = vxpose.xlu0.b32.cont [11/16] %v304, 128
        %1655 = vxpose.xlu0.b32.cont [12/16] %v305, 128
        %1656 = vxpose.xlu0.b32.cont [13/16] %v306, 128
        %1657 = vxpose.xlu0.b32.cont [14/16] %v307, 128
        %1658 = vxpose.xlu0.b32.cont [15/16] %v308, 128
        %1659 = vxpose.xlu0.b32.end [16/16] %v309, 128
        %v1660 = vpop.trf.xlu0
        %v1661 = vpop.trf.xlu0
        %v1662 = vpop.trf.xlu0
        %v1663 = vpop.trf.xlu0
        %v1664 = vpop.trf.xlu0
        %v1665 = vpop.trf.xlu0
        %v1666 = vpop.trf.xlu0
        %v1667 = vpop.trf.xlu0
        %v1668 = vpop.trf.xlu0
        %v1669 = vpop.trf.xlu0
        %v1670 = vpop.trf.xlu0
        %v1671 = vpop.trf.xlu0
        %v1672 = vpop.trf.xlu0
        %v1673 = vpop.trf.xlu0
        %v1674 = vpop.trf.xlu0
        %v1675 = vpop.trf.xlu0
        %1676 = vxpose.xlu0.b32.start [1/16] %v310, 128
        %1677 = vxpose.xlu0.b32.cont [2/16] %v311, 128
        %1678 = vxpose.xlu0.b32.cont [3/16] %v312, 128
        %1679 = vxpose.xlu0.b32.cont [4/16] %v313, 128
        %1680 = vxpose.xlu0.b32.cont [5/16] %v314, 128
        %1681 = vxpose.xlu0.b32.cont [6/16] %v315, 128
        %1682 = vxpose.xlu0.b32.cont [7/16] %v316, 128
        %1683 = vxpose.xlu0.b32.cont [8/16] %v317, 128
        %1684 = vxpose.xlu0.b32.cont [9/16] %v318, 128
        %1685 = vxpose.xlu0.b32.cont [10/16] %v319, 128
        %1686 = vxpose.xlu0.b32.cont [11/16] %v320, 128
        %1687 = vxpose.xlu0.b32.cont [12/16] %v321, 128
        %1688 = vxpose.xlu0.b32.cont [13/16] %v322, 128
        %1689 = vxpose.xlu0.b32.cont [14/16] %v323, 128
        %1690 = vxpose.xlu0.b32.cont [15/16] %v324, 128
        %1691 = vxpose.xlu0.b32.end [16/16] %v325, 128
        %v1692 = vpop.trf.xlu0
        %v1693 = vpop.trf.xlu0
        %v1694 = vpop.trf.xlu0
        %v1695 = vpop.trf.xlu0
        %v1696 = vpop.trf.xlu0
        %v1697 = vpop.trf.xlu0
        %v1698 = vpop.trf.xlu0
        %v1699 = vpop.trf.xlu0
        %v1700 = vpop.trf.xlu0
        %v1701 = vpop.trf.xlu0
        %v1702 = vpop.trf.xlu0
        %v1703 = vpop.trf.xlu0
        %v1704 = vpop.trf.xlu0
        %v1705 = vpop.trf.xlu0
        %v1706 = vpop.trf.xlu0
        %v1707 = vpop.trf.xlu0
        %1708 = vmatpush.msra.mxu0 %v1610
        %1709 = vmatpush.msra.mxu0 %v1608
        %1710 = vmatpush.msra.mxu0 %v1606
        %1711 = vmatpush.msra.mxu0 %v1604
        %1712 = vmatpush.msra.mxu0 %v1602
        %1713 = vmatpush.msra.mxu0 %v1600
        %1714 = vmatpush.msra.mxu0 %v1598
        %1715 = vmatpush.msra.mxu0 %v1596
        %1716 = vmatpush.msra.mxu0 %v1594
        %1717 = vmatpush.msra.mxu0 %v1592
        %1718 = vmatpush.msra.mxu0 %v1590
        %1719 = vmatpush.msra.mxu0 %v1588
        %1720 = vmatpush.msra.mxu0 %v1586
        %1721 = vmatpush.msra.mxu0 %v1584
        %1722 = vmatpush.msra.mxu0 %v1582
        %1723 = vmatpush.msra.mxu0 %v1580
        %1724 = vmatmul.f32.gmra.mxu0 %v1660
        %v1725 = vpop.f32.mrf.mxu0
        %v1726 = vadd.f32 0.0, %v1725
        %1727 = vmatmul.f32.gmra.mxu0 %v1661
        %v1728 = vpop.f32.mrf.mxu0
        %v1729 = vadd.f32 0.0, %v1728
        %1730 = vmatmul.f32.gmra.mxu0 %v1662
        %v1731 = vpop.f32.mrf.mxu0
        %v1732 = vadd.f32 0.0, %v1731
        %1733 = vmatmul.f32.gmra.mxu0 %v1663
        %v1734 = vpop.f32.mrf.mxu0
        %v1735 = vadd.f32 0.0, %v1734
        %1736 = vmatmul.f32.gmra.mxu0 %v1664
        %v1737 = vpop.f32.mrf.mxu0
        %v1738 = vadd.f32 0.0, %v1737
        %1739 = vmatmul.f32.gmra.mxu0 %v1665
        %v1740 = vpop.f32.mrf.mxu0
        %v1741 = vadd.f32 0.0, %v1740
        %1742 = vmatmul.f32.gmra.mxu0 %v1666
        %v1743 = vpop.f32.mrf.mxu0
        %v1744 = vadd.f32 0.0, %v1743
        %1745 = vmatmul.f32.gmra.mxu0 %v1667
        %v1746 = vpop.f32.mrf.mxu0
        %v1747 = vadd.f32 0.0, %v1746
        %1748 = vdwg.mxu0
        %1749 = vmatpush.msra.mxu0 %v1642
        %1750 = vmatpush.msra.mxu0 %v1640
        %1751 = vmatpush.msra.mxu0 %v1638
        %1752 = vmatpush.msra.mxu0 %v1636
        %1753 = vmatpush.msra.mxu0 %v1634
        %1754 = vmatpush.msra.mxu0 %v1632
        %1755 = vmatpush.msra.mxu0 %v1630
        %1756 = vmatpush.msra.mxu0 %v1628
        %1757 = vmatpush.msra.mxu0 %v1626
        %1758 = vmatpush.msra.mxu0 %v1624
        %1759 = vmatpush.msra.mxu0 %v1622
        %1760 = vmatpush.msra.mxu0 %v1620
        %1761 = vmatpush.msra.mxu0 %v1618
        %1762 = vmatpush.msra.mxu0 %v1616
        %1763 = vmatpush.msra.mxu0 %v1614
        %1764 = vmatpush.msra.mxu0 %v1612
        %1765 = vmatmul.f32.gmra.mxu0 %v1692
        %v1766 = vpop.f32.mrf.mxu0
        %v1767 = vadd.f32 %v1726, %v1766
        %1768 = vmatmul.f32.gmra.mxu0 %v1693
        %v1769 = vpop.f32.mrf.mxu0
        %v1770 = vadd.f32 %v1729, %v1769
        %1771 = vmatmul.f32.gmra.mxu0 %v1694
        %v1772 = vpop.f32.mrf.mxu0
        %v1773 = vadd.f32 %v1732, %v1772
        %1774 = vmatmul.f32.gmra.mxu0 %v1695
        %v1775 = vpop.f32.mrf.mxu0
        %v1776 = vadd.f32 %v1735, %v1775
        %1777 = vmatmul.f32.gmra.mxu0 %v1696
        %v1778 = vpop.f32.mrf.mxu0
        %v1779 = vadd.f32 %v1738, %v1778
        %1780 = vmatmul.f32.gmra.mxu0 %v1697
        %v1781 = vpop.f32.mrf.mxu0
        %v1782 = vadd.f32 %v1741, %v1781
        %1783 = vmatmul.f32.gmra.mxu0 %v1698
        %v1784 = vpop.f32.mrf.mxu0
        %v1785 = vadd.f32 %v1744, %v1784
        %1786 = vmatmul.f32.gmra.mxu0 %v1699
        %v1787 = vpop.f32.mrf.mxu0
        %v1788 = vadd.f32 %v1747, %v1787
        %1789 = vdwg.mxu0
        %1790 = vmatpush.msra.mxu0 %v1611
        %1791 = vmatpush.msra.mxu0 %v1609
        %1792 = vmatpush.msra.mxu0 %v1607
        %1793 = vmatpush.msra.mxu0 %v1605
        %1794 = vmatpush.msra.mxu0 %v1603
        %1795 = vmatpush.msra.mxu0 %v1601
        %1796 = vmatpush.msra.mxu0 %v1599
        %1797 = vmatpush.msra.mxu0 %v1597
        %1798 = vmatpush.msra.mxu0 %v1595
        %1799 = vmatpush.msra.mxu0 %v1593
        %1800 = vmatpush.msra.mxu0 %v1591
        %1801 = vmatpush.msra.mxu0 %v1589
        %1802 = vmatpush.msra.mxu0 %v1587
        %1803 = vmatpush.msra.mxu0 %v1585
        %1804 = vmatpush.msra.mxu0 %v1583
        %1805 = vmatpush.msra.mxu0 %v1581
        %1806 = vmatmul.f32.gmra.mxu0 %v1660
        %v1807 = vpop.f32.mrf.mxu0
        %v1808 = vadd.f32 0.0, %v1807
        %1809 = vmatmul.f32.gmra.mxu0 %v1661
        %v1810 = vpop.f32.mrf.mxu0
        %v1811 = vadd.f32 0.0, %v1810
        %1812 = vmatmul.f32.gmra.mxu0 %v1662
        %v1813 = vpop.f32.mrf.mxu0
        %v1814 = vadd.f32 0.0, %v1813
        %1815 = vmatmul.f32.gmra.mxu0 %v1663
        %v1816 = vpop.f32.mrf.mxu0
        %v1817 = vadd.f32 0.0, %v1816
        %1818 = vmatmul.f32.gmra.mxu0 %v1664
        %v1819 = vpop.f32.mrf.mxu0
        %v1820 = vadd.f32 0.0, %v1819
        %1821 = vmatmul.f32.gmra.mxu0 %v1665
        %v1822 = vpop.f32.mrf.mxu0
        %v1823 = vadd.f32 0.0, %v1822
        %1824 = vmatmul.f32.gmra.mxu0 %v1666
        %v1825 = vpop.f32.mrf.mxu0
        %v1826 = vadd.f32 0.0, %v1825
        %1827 = vmatmul.f32.gmra.mxu0 %v1667
        %v1828 = vpop.f32.mrf.mxu0
        %v1829 = vadd.f32 0.0, %v1828
        %1830 = vdwg.mxu0
        %1831 = vmatpush.msra.mxu0 %v1643
        %1832 = vmatpush.msra.mxu0 %v1641
        %1833 = vmatpush.msra.mxu0 %v1639
        %1834 = vmatpush.msra.mxu0 %v1637
        %1835 = vmatpush.msra.mxu0 %v1635
        %1836 = vmatpush.msra.mxu0 %v1633
        %1837 = vmatpush.msra.mxu0 %v1631
        %1838 = vmatpush.msra.mxu0 %v1629
        %1839 = vmatpush.msra.mxu0 %v1627
        %1840 = vmatpush.msra.mxu0 %v1625
        %1841 = vmatpush.msra.mxu0 %v1623
        %1842 = vmatpush.msra.mxu0 %v1621
        %1843 = vmatpush.msra.mxu0 %v1619
        %1844 = vmatpush.msra.mxu0 %v1617
        %1845 = vmatpush.msra.mxu0 %v1615
        %1846 = vmatpush.msra.mxu0 %v1613
        %1847 = vmatmul.f32.gmra.mxu0 %v1692
        %v1848 = vpop.f32.mrf.mxu0
        %v1849 = vadd.f32 %v1808, %v1848
        %1850 = vmatmul.f32.gmra.mxu0 %v1693
        %v1851 = vpop.f32.mrf.mxu0
        %v1852 = vadd.f32 %v1811, %v1851
        %1853 = vmatmul.f32.gmra.mxu0 %v1694
        %v1854 = vpop.f32.mrf.mxu0
        %v1855 = vadd.f32 %v1814, %v1854
        %1856 = vmatmul.f32.gmra.mxu0 %v1695
        %v1857 = vpop.f32.mrf.mxu0
        %v1858 = vadd.f32 %v1817, %v1857
        %1859 = vmatmul.f32.gmra.mxu0 %v1696
        %v1860 = vpop.f32.mrf.mxu0
        %v1861 = vadd.f32 %v1820, %v1860
        %1862 = vmatmul.f32.gmra.mxu0 %v1697
        %v1863 = vpop.f32.mrf.mxu0
        %v1864 = vadd.f32 %v1823, %v1863
        %1865 = vmatmul.f32.gmra.mxu0 %v1698
        %v1866 = vpop.f32.mrf.mxu0
        %v1867 = vadd.f32 %v1826, %v1866
        %1868 = vmatmul.f32.gmra.mxu0 %v1699
        %v1869 = vpop.f32.mrf.mxu0
        %v1870 = vadd.f32 %v1829, %v1869
        %1871 = vdwg.mxu0
        %1872 = vst [vmem:[%s250] sm:$0xff] %v1767
        %1873 = vst [vmem:[%s250 + $0x8] sm:$0xff] %v1849
        %1874 = vst [vmem:[%s250 + $0x10] sm:$0xff] %v1770
        %1875 = vst [vmem:[%s250 + $0x18] sm:$0xff] %v1852
        %1876 = vst [vmem:[%s250 + $0x20] sm:$0xff] %v1773
        %1877 = vst [vmem:[%s250 + $0x28] sm:$0xff] %v1855
        %1878 = vst [vmem:[%s250 + $0x30] sm:$0xff] %v1776
        %1879 = vst [vmem:[%s250 + $0x38] sm:$0xff] %v1858
        %1880 = vst [vmem:[%s250 + $0x40] sm:$0xff] %v1779
        %1881 = vst [vmem:[%s250 + $0x48] sm:$0xff] %v1861
        %1882 = vst [vmem:[%s250 + $0x50] sm:$0xff] %v1782
        %1883 = vst [vmem:[%s250 + $0x58] sm:$0xff] %v1864
        %1884 = vst [vmem:[%s250 + $0x60] sm:$0xff] %v1785
        %1885 = vst [vmem:[%s250 + $0x68] sm:$0xff] %v1867
        %1886 = vst [vmem:[%s250 + $0x70] sm:$0xff] %v1788
        %1887 = vst [vmem:[%s250 + $0x78] sm:$0xff] %v1870
        %v1888 = vrot.slane %v1451, 7
        %vm1889 = vcmask 1040384
        %v1890 = vsel %vm1889, %v1380, %v1888
        %v1891 = vlaneseq
        %vm1892 = vcmp.ge.s32.totalorder %v1891, 0
        %vm1893 = vcmp.lt.s32.totalorder %v1891, 256
        %vm1894 = vmand %vm1892, %vm1893
        %1895 = vst.msk [vmem:[%s257] sm:$0x3] %vm1894, %v1890
        %v1896 = vsub.f32 %v1767, %v278
        %v1897 = vsub.f32 %v1849, %v279
        %v1898 = vsub.f32 %v1770, %v280
        %v1899 = vsub.f32 %v1852, %v281
        %v1900 = vsub.f32 %v1773, %v282
        %v1901 = vsub.f32 %v1855, %v283
        %v1902 = vsub.f32 %v1776, %v284
        %v1903 = vsub.f32 %v1858, %v285
        %v1904 = vsub.f32 %v1779, %v286
        %v1905 = vsub.f32 %v1861, %v287
        %v1906 = vsub.f32 %v1782, %v288
        %v1907 = vsub.f32 %v1864, %v289
        %v1908 = vsub.f32 %v1785, %v290
        %v1909 = vsub.f32 %v1867, %v291
        %v1910 = vsub.f32 %v1788, %v292
        %v1911 = vsub.f32 %v1870, %v293
        %v1912 = vmul.f32 %v1896, %v1896
        %v1913 = vmul.f32 %v1897, %v1897
        %v1914 = vmul.f32 %v1898, %v1898
        %v1915 = vmul.f32 %v1899, %v1899
        %v1916 = vmul.f32 %v1900, %v1900
        %v1917 = vmul.f32 %v1901, %v1901
        %v1918 = vmul.f32 %v1902, %v1902
        %v1919 = vmul.f32 %v1903, %v1903
        %v1920 = vmul.f32 %v1904, %v1904
        %v1921 = vmul.f32 %v1905, %v1905
        %v1922 = vmul.f32 %v1906, %v1906
        %v1923 = vmul.f32 %v1907, %v1907
        %v1924 = vmul.f32 %v1908, %v1908
        %v1925 = vmul.f32 %v1909, %v1909
        %v1926 = vmul.f32 %v1910, %v1910
        %v1927 = vmul.f32 %v1911, %v1911
        %v1928 = vadd.f32 %v1912, %v1914
        %v1929 = vadd.f32 %v1928, %v1916
        %v1930 = vadd.f32 %v1929, %v1918
        %v1931 = vadd.f32 %v1930, %v1920
        %v1932 = vadd.f32 %v1931, %v1922
        %v1933 = vadd.f32 %v1932, %v1924
        %v1934 = vadd.f32 %v1933, %v1926
        %v1935 = vrot.slane %v1934, 4
        %v1936 = vadd.f32 %v1934, %v1935
        %v1937 = vrot.slane %v1936, 2
        %v1938 = vadd.f32 %v1936, %v1937
        %v1939 = vrot.slane %v1938, 1
        %v1940 = vadd.f32 %v1938, %v1939
        %v1941 = vadd.f32 %v1913, %v1915
        %v1942 = vadd.f32 %v1941, %v1917
        %v1943 = vadd.f32 %v1942, %v1919
        %v1944 = vadd.f32 %v1943, %v1921
        %v1945 = vadd.f32 %v1944, %v1923
        %v1946 = vadd.f32 %v1945, %v1925
        %v1947 = vadd.f32 %v1946, %v1927
        %v1948 = vrot.slane %v1947, 4
        %v1949 = vadd.f32 %v1947, %v1948
        %v1950 = vrot.slane %v1949, 2
        %v1951 = vadd.f32 %v1949, %v1950
        %v1952 = vrot.slane %v1951, 1
        %v1953 = vadd.f32 %v1951, %v1952
        %v1956 = vrot.slane %v1953, 7
        %v1957 = vsel %vm1889, %v1940, %v1956
        %1959 = vst.msk [vmem:[%s264] sm:$0x3] %vm1894, %v1957
        %s1960 = sand.u32 %s115, 1
        %s1961 = scalar_lea.sflag [#allocation3], %s1960
        %s1962 = sand.u32 %s115, 1
        %s1963 = smul.addr %s1962, 128
        %s1964 = scalar_lea.vmem [#allocation2], %s1963
        %s1965 = sand.u32 %s23, 1
        %s1966 = scalar_lea.sflag [#allocation5], %s1965
        %s1967 = sand.u32 %s143, 1
        %s1968 = smul.addr %s1967, 2
        %s1969 = scalar_lea.vmem [#allocation4], %s1968
        %s1970 = sand.u32 %s23, 1
        %s1971 = scalar_lea.sflag [#allocation5], %s1970
        %s1972 = sand.u32 %s171, 1
        %s1973 = smul.addr %s1972, 2
        %s1974 = scalar_lea.vmem [#allocation6], %s1973
        // Predicated region
        $region33: #{tpu_custom_call.1} parent=31 // pred_check
          %p1975 = pneg %p125
        $region34: #{tpu_custom_call.1} parent=31 // pred_check_branch
          %1977 = sbr.rel (%p1975) target = $region36
        $region35: #{tpu_custom_call.1} parent=31 // pred_region
          %s1978 = smul.u32 2, %s28
          %1980 = vsyncadd %s1961, 0
          %s1981 = smul.addr %s27, 16
          %s1982 = sadd.s32 %s1978, %s1981
          %s1983 = smul.addr %s1982, 8
          %s1984 = scalar_lea.hbm %s3, %s1983
          %s1985 = sshll.u32 %s1964, 4
          %s1986 = int_to_ptr.vmem [resolvable:$true] %s1985
          %s1987 = sshll.u32 %s1984, 4
          %s1988 = int_to_ptr.hbm [resolvable:$true] %s1987
          %1993 = dma.vmem_to_hbm [thread:$0]  %s1986, 2048, %s1988, %s1961, 256, 256, 16
        $region36: #{tpu_custom_call.1} parent=31 // pred_fallthru
          _
        // Predicated region
        $region37: #{tpu_custom_call.1} parent=31 // pred_check
          %p1994 = pneg %p153
        $region38: #{tpu_custom_call.1} parent=31 // pred_check_branch
          %1996 = sbr.rel (%p1994) target = $region40
        $region39: #{tpu_custom_call.1} parent=31 // pred_region
          %s1997 = smul.u32 2, %s28
          %1999 = vsyncadd %s1966, 0
          %s2000 = smul.addr %s27, 2
          %s2001 = sadd.s32 %s1997, %s2000
          %s2002 = scalar_lea.hbm %s4, %s2001
          %s2004 = sshll.u32 %s1969, 4
          %s2005 = int_to_ptr.vmem [resolvable:$true] %s2004
          %s2006 = sshll.u32 %s2002, 4
          %s2007 = int_to_ptr.hbm [resolvable:$true] %s2006
          %2009 = dma.vmem_to_hbm [thread:$0]  %s2005, 32, %s2007, %s1966
        $region40: #{tpu_custom_call.1} parent=31 // pred_fallthru
          _
        // Predicated region
        $region41: #{tpu_custom_call.1} parent=31 // pred_check
          %p2010 = pneg %p181
        $region42: #{tpu_custom_call.1} parent=31 // pred_check_branch
          %2012 = sbr.rel (%p2010) target = $region44
        $region43: #{tpu_custom_call.1} parent=31 // pred_region
          %s2013 = smul.u32 2, %s28
          %2015 = vsyncadd %s1971, 0
          %s2016 = smul.addr %s27, 2
          %s2017 = sadd.s32 %s2013, %s2016
          %s2018 = scalar_lea.hbm %s5, %s2017
          %s2020 = sshll.u32 %s1974, 4
          %s2021 = int_to_ptr.vmem [resolvable:$true] %s2020
          %s2022 = sshll.u32 %s2018, 4
          %s2023 = int_to_ptr.hbm [resolvable:$true] %s2022
          %2025 = dma.vmem_to_hbm [thread:$0]  %s2021, 32, %s2023, %s1971
        $region44: #{tpu_custom_call.1} parent=31 // pred_fallthru
          _
      $region32: #{tpu_custom_call.1} parent=5 // pred_fallthru
        _
      %p2026 = scmp.le.s32.totalorder 2, %s18
      // Predicated region
      $region45: #{tpu_custom_call.1} parent=5 // pred_check
        %p2027 = pneg %p2026
      $region46: #{tpu_custom_call.1} parent=5 // pred_check_branch
        %2029 = sbr.rel (%p2027) target = $region48
      $region47: #{tpu_custom_call.1} parent=5 // pred_region
        %s2030 = ssub.s32 %s18, 2
        // Predicated region
        $region49: #{tpu_custom_call.1} parent=47 // pred_check
          %p2031 = pneg %p131
        $region50: #{tpu_custom_call.1} parent=47 // pred_check_branch
          %2033 = sbr.rel (%p2031) target = $region52
        $region51: #{tpu_custom_call.1} parent=47 // pred_region
          %s2034 = sand.u32 %s116, 1
          %s2035 = scalar_lea.sflag [#allocation3], %s2034
          %s2036 = sand.u32 %s116, 1
          %s2037 = smul.addr %s2036, 128
          %s2038 = scalar_lea.vmem [#allocation2], %s2037
          %2040 = dma.done %s2035, 2048
        $region52: #{tpu_custom_call.1} parent=47 // pred_fallthru
          _
        // Predicated region
        $region53: #{tpu_custom_call.1} parent=47 // pred_check
          %p2041 = pneg %p159
        $region54: #{tpu_custom_call.1} parent=47 // pred_check_branch
          %2043 = sbr.rel (%p2041) target = $region56
        $region55: #{tpu_custom_call.1} parent=47 // pred_region
          %s2044 = sand.u32 %s24, 1
          %s2045 = scalar_lea.sflag [#allocation5], %s2044
          %s2046 = sand.u32 %s144, 1
          %s2047 = smul.addr %s2046, 2
          %s2048 = scalar_lea.vmem [#allocation4], %s2047
          %2050 = dma.done %s2045, 32
        $region56: #{tpu_custom_call.1} parent=47 // pred_fallthru
          _
        // Predicated region
        $region57: #{tpu_custom_call.1} parent=47 // pred_check
          %p2051 = pneg %p187
        $region58: #{tpu_custom_call.1} parent=47 // pred_check_branch
          %2053 = sbr.rel (%p2051) target = $region60
        $region59: #{tpu_custom_call.1} parent=47 // pred_region
          %s2054 = sand.u32 %s24, 1
          %s2055 = scalar_lea.sflag [#allocation5], %s2054
          %s2056 = sand.u32 %s172, 1
          %s2057 = smul.addr %s2056, 2
          %s2058 = scalar_lea.vmem [#allocation6], %s2057
          %2060 = dma.done %s2055, 32
        $region60: #{tpu_custom_call.1} parent=47 // pred_fallthru
          _
      $region48: #{tpu_custom_call.1} parent=5 // pred_fallthru
        _
    $region6: #{tpu_custom_call.1} parent=1 // loop_footer
      %s22 = sadd.s32 1, %s18
    $region7: #{tpu_custom_call.1} parent=1 // loop_footer_branch
      %17 = sbr.rel target = $region3
    $region8: #{tpu_custom_call.1} parent=1 // loop_exit
      _
    %2061 = vsyncpa [#allocation3], 1
    %s2062 = scalar_lea.sflag [#allocation3], 1
    %2063 = vsyncpa %s2062, 1
    %2064 = vsyncpa [#allocation5], 1
    %s2065 = scalar_lea.sflag [#allocation5], 1
    %2066 = vsyncpa %s2065, 1

</llo_original>
